<compile_context>
chip_gen: v7x
topology: tpu7x:2x2x1
jax: 0.10.0
libtpu: 0.0.40
codegen_flags: <defaults>
</compile_context>

<pallas_src>
import functools

import jax
import jax.numpy as jnp
from jax import lax
from jax.experimental import pallas as pl
from jax.experimental.pallas import tpu as pltpu

# PyTorch >= 1.3 defaults to align_corners=False when not specified (as in the spec).
ALIGN_CORNERS = False


# ------------------------------- Pallas kernel ------------------------------ #

def _affine_resample_kernel(params_ref, x_ref, o_ref, *, H, W):
    """o = grid_sample(grid_sample(x, grid(params[0])), grid(params[1])), bilinear/zeros.

    params_ref: (2, 6) f32 in SMEM -- the two flattened 2x3 affine matrices.
    x_ref/o_ref: (R, H*W) f32 in VMEM -- rows are channels (c and f stacked),
                 columns are row-major pixels (lane-dense).
    """
    P = H * W
    fW, fH = float(W), float(H)

    # Per-output-pixel coordinates along lanes: shape (1, P).
    p_idx = lax.broadcasted_iota(jnp.int32, (1, P), 1).astype(jnp.float32)
    row = jnp.floor((p_idx + 0.5) * (1.0 / fW))      # output row i   (exact)
    col = p_idx - row * fW                           # output col j   (exact)
    # Input-pixel id per sublane row: shape (P, P).
    q_iota = lax.broadcasted_iota(jnp.int32, (P, P), 0)

    if ALIGN_CORNERS:
        base_x = -1.0 + col * (2.0 / (fW - 1.0))
        base_y = -1.0 + row * (2.0 / (fH - 1.0))
    else:                                            # F.affine_grid base grid
        base_x = (2.0 * col + 1.0) / fW - 1.0
        base_y = (2.0 * row + 1.0) / fH - 1.0

    def build_A(t):
        """(P, P) sampling matrix A with A[q_in, p_out] = bilinear weight."""
        a00 = params_ref[t, 0]; a01 = params_ref[t, 1]; a02 = params_ref[t, 2]
        a10 = params_ref[t, 3]; a11 = params_ref[t, 4]; a12 = params_ref[t, 5]
        gx = a00 * base_x + a01 * base_y + a02       # affine_grid
        gy = a10 * base_x + a11 * base_y + a12
        if ALIGN_CORNERS:                            # grid_sample unnormalize
            ix = (gx + 1.0) * 0.5 * (fW - 1.0)
            iy = (gy + 1.0) * 0.5 * (fH - 1.0)
        else:
            ix = ((gx + 1.0) * fW - 1.0) * 0.5
            iy = ((gy + 1.0) * fH - 1.0) * 0.5
        x0 = jnp.floor(ix); y0 = jnp.floor(iy)
        fx = ix - x0;       fy = iy - y0
        taps = ((x0,       y0,       (1.0 - fx) * (1.0 - fy)),
                (x0 + 1.0, y0,       fx * (1.0 - fy)),
                (x0,       y0 + 1.0, (1.0 - fx) * fy),
                (x0 + 1.0, y0 + 1.0, fx * fy))
        A = None
        for xt, yt, wt in taps:
            # padding_mode='zeros': out-of-bounds taps contribute nothing.
            valid = ((xt >= 0.0) & (xt <= fW - 1.0) &
                     (yt >= 0.0) & (yt <= fH - 1.0))
            w = jnp.where(valid, wt, 0.0)            # (1, P)
            q = (yt * fW + xt).astype(jnp.int32)     # (1, P) input pixel id
            term = jnp.where(q_iota == q, w, 0.0)    # one non-zero row per column
            A = term if A is None else A + term
        return A

    x = x_ref[...]
    # Pass 1: rotation grid, Pass 2: translation grid (sequential, like the spec).
    y = jnp.dot(x, build_A(0), preferred_element_type=jnp.float32)
    z = jnp.dot(y, build_A(1), preferred_element_type=jnp.float32)
    o_ref[...] = z.astype(o_ref.dtype)


def _pallas_double_resample(x2d, params, h, w):
    """x2d: (R, h*w) channel rows; params: (2, 6) affine matrices. Single fused call."""
    R, P = x2d.shape
    R_pad = ((R + 7) // 8) * 8                       # sublane-align the row count
    if R_pad != R:
        x2d = jnp.pad(x2d, ((0, R_pad - R), (0, 0)))
    kernel = functools.partial(_affine_resample_kernel, H=h, W=w)
    out = pl.pallas_call(
        kernel,
        out_shape=jax.ShapeDtypeStruct((R_pad, P), jnp.float32),
        grid=(1,),
        in_specs=[
            pl.BlockSpec(memory_space=pltpu.MemorySpace.SMEM),   # 2x6 affine params
            pl.BlockSpec((R_pad, P), lambda i: (0, 0)),          # all channels, lane-dense
        ],
        out_specs=pl.BlockSpec((R_pad, P), lambda i: (0, 0)),
        compiler_params=pltpu.CompilerParams(dimension_semantics=("arbitrary",)),
    )(params, x2d)
    return out[:R]


# --------------------------------- Wrapper ---------------------------------- #

@jax.jit
def transform_apply(c, f, theta, velo):
    """JAX/Pallas equivalent of transform.forward((c, f), theta, velo)."""
    n, cc, h, w = c.shape
    nf, cff, hf, wf = f.shape
    # The torch code builds one grid from c's size and uses it for both tensors.
    assert (hf, wf) == (h, w), "c and f must share spatial dims (grid built from csize)"

    theta = jnp.asarray(theta, jnp.float32)
    velo = jnp.asarray(velo, jnp.float32)
    ct, st = jnp.cos(theta), jnp.sin(theta)
    zero = jnp.zeros((), jnp.float32)
    one = jnp.ones((), jnp.float32)
    # [[cos t, sin(-t), 0], [sin t, cos t, 0]]
    rot = jnp.stack([ct, -st, zero, st, ct, zero])
    # [[1, 0, velo[0]*0.002], [0, 1, -velo[2]*0.002]]
    tx = velo[0] * 0.002
    ty = -velo[2] * 0.002
    trans = jnp.stack([one, zero, tx, zero, one, ty])
    params = jnp.stack([rot, trans]).astype(jnp.float32)        # (2, 6)

    # Stack c's and f's channels on the sublane axis; pixels (row-major) on lanes.
    x2d = jnp.concatenate(
        [c.reshape(n * cc, h * w), f.reshape(nf * cff, h * w)], axis=0
    ).astype(jnp.float32)
    out = _pallas_double_resample(x2d, params, h, w)
    c_out = out[: n * cc].reshape(n, cc, h, w)
    f_out = out[n * cc:].reshape(nf, cff, h, w)
    return c_out, f_out


# ----------------------------------- Demo ----------------------------------- #

if __name__ == "__main__":
    key = jax.random.PRNGKey(0)
    kc, kf, kv = jax.random.split(key, 3)
    # The spec's affine_grid uses a batch-1 theta, so batch = 1; f channel count = 32.
    N, CC, CF, H, W = 1, 4, 32, 16, 16
    c = jax.random.normal(kc, (N, CC, H, W), jnp.float32)
    f = jax.random.normal(kf, (N, CF, H, W), jnp.float32)
    theta = 0.3
    velo = jax.random.normal(kv, (3,), jnp.float32)

    c_out, f_out = transform_apply(c, f, theta, velo)
    jax.block_until_ready((c_out, f_out))
    assert c_out.shape == c.shape and f_out.shape == f.shape
    assert bool(jnp.all(jnp.isfinite(c_out))) and bool(jnp.all(jnp.isfinite(f_out)))

    # Sanity: theta=0, velo=0 -> identity transform.
    c_id, f_id = transform_apply(c, f, 0.0, jnp.zeros((3,), jnp.float32))
    assert bool(jnp.allclose(c_id, c, atol=2e-2, rtol=2e-2))
    assert bool(jnp.allclose(f_id, f, atol=2e-2, rtol=2e-2))

    # Sanity: theta=0, velo=[125,0,0] -> tx=0.25 -> exact shift by 2 pixels (zeros fill).
    c_sh, _ = transform_apply(c, f, 0.0, jnp.array([125.0, 0.0, 0.0], jnp.float32))
    expected = jnp.concatenate([c[..., 2:], jnp.zeros_like(c[..., :2])], axis=-1)
    assert bool(jnp.allclose(c_sh, expected, atol=2e-2, rtol=2e-2))
    assert bool(jnp.max(jnp.abs(c_sh[..., -2:])) < 1e-5)

    print("KERNEL_OK")
</pallas_src>

<mosaic_0001>
module attributes {stable_mosaic.version = 11 : i64} {
  func.func @_affine_resample_kernel(%arg0: i32, %arg1: memref<2x6xf32, #tpu.memory_space<smem>>, %arg2: memref<40x256xf32, #tpu.memory_space<vmem>>, %arg3: memref<40x256xf32, #tpu.memory_space<vmem>>) attributes {dimension_semantics = [#tpu.dimension_semantics<arbitrary>], iteration_bounds = array<i64: 1>, scalar_prefetch = 0 : i64, scratch_operands = 0 : i64, tpu.core_type = #tpu.core_type<tc>, window_params = [{transform_indices = @transform_0, window_bounds = array<i64: 2, 6>}, {pipeline_mode = #tpu.pipeline_mode<synchronous>, transform_indices = @transform_1, window_bounds = array<i64: 40, 256>}, {pipeline_mode = #tpu.pipeline_mode<synchronous>, transform_indices = @transform_2, window_bounds = array<i64: 40, 256>}]} {
    %0 = tpu.iota {dimensions = array<i32: 1>} : vector<1x256xi32>
    %1 = arith.sitofp %0 : vector<1x256xi32> to vector<1x256xf32>
    %cst = arith.constant 5.000000e-01 : f32
    %2 = vector.broadcast %cst : f32 to vector<1x256xf32>
    %3 = arith.addf %1, %2 : vector<1x256xf32>
    %cst_0 = arith.constant 6.250000e-02 : f32
    %4 = vector.broadcast %cst_0 : f32 to vector<1x256xf32>
    %5 = arith.mulf %3, %4 : vector<1x256xf32>
    %6 = math.floor %5 : vector<1x256xf32>
    %cst_1 = arith.constant 1.600000e+01 : f32
    %7 = vector.broadcast %cst_1 : f32 to vector<1x256xf32>
    %8 = arith.mulf %6, %7 : vector<1x256xf32>
    %9 = arith.subf %1, %8 : vector<1x256xf32>
    %10 = tpu.iota {dimensions = array<i32: 0>} : vector<256x256xi32>
    %cst_2 = arith.constant 2.000000e+00 : f32
    %11 = vector.broadcast %cst_2 : f32 to vector<1x256xf32>
    %12 = arith.mulf %11, %9 : vector<1x256xf32>
    %cst_3 = arith.constant 1.000000e+00 : f32
    %13 = vector.broadcast %cst_3 : f32 to vector<1x256xf32>
    %14 = arith.addf %12, %13 : vector<1x256xf32>
    %cst_4 = arith.constant 1.600000e+01 : f32
    %15 = vector.broadcast %cst_4 : f32 to vector<1x256xf32>
    %16 = arith.divf %14, %15 : vector<1x256xf32>
    %cst_5 = arith.constant 1.000000e+00 : f32
    %17 = vector.broadcast %cst_5 : f32 to vector<1x256xf32>
    %18 = arith.subf %16, %17 : vector<1x256xf32>
    %cst_6 = arith.constant 2.000000e+00 : f32
    %19 = vector.broadcast %cst_6 : f32 to vector<1x256xf32>
    %20 = arith.mulf %19, %6 : vector<1x256xf32>
    %cst_7 = arith.constant 1.000000e+00 : f32
    %21 = vector.broadcast %cst_7 : f32 to vector<1x256xf32>
    %22 = arith.addf %20, %21 : vector<1x256xf32>
    %cst_8 = arith.constant 1.600000e+01 : f32
    %23 = vector.broadcast %cst_8 : f32 to vector<1x256xf32>
    %24 = arith.divf %22, %23 : vector<1x256xf32>
    %cst_9 = arith.constant 1.000000e+00 : f32
    %25 = vector.broadcast %cst_9 : f32 to vector<1x256xf32>
    %26 = arith.subf %24, %25 : vector<1x256xf32>
    %c0 = arith.constant 0 : index
    %c0_10 = arith.constant 0 : index
    %27 = vector.load %arg2[%c0, %c0_10] : memref<40x256xf32, #tpu.memory_space<vmem>>, vector<40x256xf32>
    %c0_11 = arith.constant 0 : index
    %c0_12 = arith.constant 0 : index
    %28 = memref.load %arg1[%c0_11, %c0_12] : memref<2x6xf32, #tpu.memory_space<smem>>
    %c0_13 = arith.constant 0 : index
    %c1 = arith.constant 1 : index
    %29 = memref.load %arg1[%c0_13, %c1] : memref<2x6xf32, #tpu.memory_space<smem>>
    %c0_14 = arith.constant 0 : index
    %c2 = arith.constant 2 : index
    %30 = memref.load %arg1[%c0_14, %c2] : memref<2x6xf32, #tpu.memory_space<smem>>
    %c0_15 = arith.constant 0 : index
    %c3 = arith.constant 3 : index
    %31 = memref.load %arg1[%c0_15, %c3] : memref<2x6xf32, #tpu.memory_space<smem>>
    %c0_16 = arith.constant 0 : index
    %c4 = arith.constant 4 : index
    %32 = memref.load %arg1[%c0_16, %c4] : memref<2x6xf32, #tpu.memory_space<smem>>
    %c0_17 = arith.constant 0 : index
    %c5 = arith.constant 5 : index
    %33 = memref.load %arg1[%c0_17, %c5] : memref<2x6xf32, #tpu.memory_space<smem>>
    %34 = vector.broadcast %28 : f32 to vector<1x256xf32>
    %35 = arith.mulf %34, %18 : vector<1x256xf32>
    %36 = vector.broadcast %29 : f32 to vector<1x256xf32>
    %37 = arith.mulf %36, %26 : vector<1x256xf32>
    %38 = arith.addf %35, %37 : vector<1x256xf32>
    %39 = vector.broadcast %30 : f32 to vector<1x256xf32>
    %40 = arith.addf %38, %39 : vector<1x256xf32>
    %41 = vector.broadcast %31 : f32 to vector<1x256xf32>
    %42 = arith.mulf %41, %18 : vector<1x256xf32>
    %43 = vector.broadcast %32 : f32 to vector<1x256xf32>
    %44 = arith.mulf %43, %26 : vector<1x256xf32>
    %45 = arith.addf %42, %44 : vector<1x256xf32>
    %46 = vector.broadcast %33 : f32 to vector<1x256xf32>
    %47 = arith.addf %45, %46 : vector<1x256xf32>
    %cst_18 = arith.constant 1.000000e+00 : f32
    %48 = vector.broadcast %cst_18 : f32 to vector<1x256xf32>
    %49 = arith.addf %40, %48 : vector<1x256xf32>
    %cst_19 = arith.constant 1.600000e+01 : f32
    %50 = vector.broadcast %cst_19 : f32 to vector<1x256xf32>
    %51 = arith.mulf %49, %50 : vector<1x256xf32>
    %cst_20 = arith.constant 1.000000e+00 : f32
    %52 = vector.broadcast %cst_20 : f32 to vector<1x256xf32>
    %53 = arith.subf %51, %52 : vector<1x256xf32>
    %cst_21 = arith.constant 5.000000e-01 : f32
    %54 = vector.broadcast %cst_21 : f32 to vector<1x256xf32>
    %55 = arith.mulf %53, %54 : vector<1x256xf32>
    %cst_22 = arith.constant 1.000000e+00 : f32
    %56 = vector.broadcast %cst_22 : f32 to vector<1x256xf32>
    %57 = arith.addf %47, %56 : vector<1x256xf32>
    %cst_23 = arith.constant 1.600000e+01 : f32
    %58 = vector.broadcast %cst_23 : f32 to vector<1x256xf32>
    %59 = arith.mulf %57, %58 : vector<1x256xf32>
    %cst_24 = arith.constant 1.000000e+00 : f32
    %60 = vector.broadcast %cst_24 : f32 to vector<1x256xf32>
    %61 = arith.subf %59, %60 : vector<1x256xf32>
    %cst_25 = arith.constant 5.000000e-01 : f32
    %62 = vector.broadcast %cst_25 : f32 to vector<1x256xf32>
    %63 = arith.mulf %61, %62 : vector<1x256xf32>
    %64 = math.floor %55 : vector<1x256xf32>
    %65 = math.floor %63 : vector<1x256xf32>
    %66 = arith.subf %55, %64 : vector<1x256xf32>
    %67 = arith.subf %63, %65 : vector<1x256xf32>
    %cst_26 = arith.constant 1.000000e+00 : f32
    %68 = vector.broadcast %cst_26 : f32 to vector<1x256xf32>
    %69 = arith.subf %68, %66 : vector<1x256xf32>
    %cst_27 = arith.constant 1.000000e+00 : f32
    %70 = vector.broadcast %cst_27 : f32 to vector<1x256xf32>
    %71 = arith.subf %70, %67 : vector<1x256xf32>
    %72 = arith.mulf %69, %71 : vector<1x256xf32>
    %cst_28 = arith.constant 1.000000e+00 : f32
    %73 = vector.broadcast %cst_28 : f32 to vector<1x256xf32>
    %74 = arith.addf %64, %73 : vector<1x256xf32>
    %cst_29 = arith.constant 1.000000e+00 : f32
    %75 = vector.broadcast %cst_29 : f32 to vector<1x256xf32>
    %76 = arith.subf %75, %67 : vector<1x256xf32>
    %77 = arith.mulf %66, %76 : vector<1x256xf32>
    %cst_30 = arith.constant 1.000000e+00 : f32
    %78 = vector.broadcast %cst_30 : f32 to vector<1x256xf32>
    %79 = arith.addf %65, %78 : vector<1x256xf32>
    %cst_31 = arith.constant 1.000000e+00 : f32
    %80 = vector.broadcast %cst_31 : f32 to vector<1x256xf32>
    %81 = arith.subf %80, %66 : vector<1x256xf32>
    %82 = arith.mulf %81, %67 : vector<1x256xf32>
    %cst_32 = arith.constant 1.000000e+00 : f32
    %83 = vector.broadcast %cst_32 : f32 to vector<1x256xf32>
    %84 = arith.addf %64, %83 : vector<1x256xf32>
    %cst_33 = arith.constant 1.000000e+00 : f32
    %85 = vector.broadcast %cst_33 : f32 to vector<1x256xf32>
    %86 = arith.addf %65, %85 : vector<1x256xf32>
    %87 = arith.mulf %66, %67 : vector<1x256xf32>
    %cst_34 = arith.constant 0.000000e+00 : f32
    %88 = vector.broadcast %cst_34 : f32 to vector<1x256xf32>
    %89 = arith.cmpf oge, %64, %88 : vector<1x256xf32>
    %cst_35 = arith.constant 1.500000e+01 : f32
    %90 = vector.broadcast %cst_35 : f32 to vector<1x256xf32>
    %91 = arith.cmpf ole, %64, %90 : vector<1x256xf32>
    %92 = arith.andi %89, %91 : vector<1x256xi1>
    %cst_36 = arith.constant 0.000000e+00 : f32
    %93 = vector.broadcast %cst_36 : f32 to vector<1x256xf32>
    %94 = arith.cmpf oge, %65, %93 : vector<1x256xf32>
    %95 = arith.andi %92, %94 : vector<1x256xi1>
    %cst_37 = arith.constant 1.500000e+01 : f32
    %96 = vector.broadcast %cst_37 : f32 to vector<1x256xf32>
    %97 = arith.cmpf ole, %65, %96 : vector<1x256xf32>
    %98 = arith.andi %95, %97 : vector<1x256xi1>
    %cst_38 = arith.constant 0.000000e+00 : f32
    %99 = vector.broadcast %cst_38 : f32 to vector<1x256xf32>
    %100 = arith.select %98, %72, %99 : vector<1x256xi1>, vector<1x256xf32>
    %cst_39 = arith.constant 1.600000e+01 : f32
    %101 = vector.broadcast %cst_39 : f32 to vector<1x256xf32>
    %102 = arith.mulf %65, %101 : vector<1x256xf32>
    %103 = arith.addf %102, %64 : vector<1x256xf32>
    %104 = arith.fptosi %103 : vector<1x256xf32> to vector<1x256xi32>
    %105 = vector.broadcast %104 : vector<1x256xi32> to vector<256x256xi32>
    %106 = arith.cmpi eq, %10, %105 : vector<256x256xi32>
    %cst_40 = arith.constant 0.000000e+00 : f32
    %107 = vector.shape_cast %100 : vector<1x256xf32> to vector<1x256xf32>
    %108 = vector.broadcast %107 : vector<1x256xf32> to vector<256x256xf32>
    %109 = vector.broadcast %cst_40 : f32 to vector<256x256xf32>
    %110 = arith.select %106, %108, %109 : vector<256x256xi1>, vector<256x256xf32>
    %cst_41 = arith.constant 0.000000e+00 : f32
    %111 = vector.broadcast %cst_41 : f32 to vector<1x256xf32>
    %112 = arith.cmpf oge, %74, %111 : vector<1x256xf32>
    %cst_42 = arith.constant 1.500000e+01 : f32
    %113 = vector.broadcast %cst_42 : f32 to vector<1x256xf32>
    %114 = arith.cmpf ole, %74, %113 : vector<1x256xf32>
    %115 = arith.andi %112, %114 : vector<1x256xi1>
    %cst_43 = arith.constant 0.000000e+00 : f32
    %116 = vector.broadcast %cst_43 : f32 to vector<1x256xf32>
    %117 = arith.cmpf oge, %65, %116 : vector<1x256xf32>
    %118 = arith.andi %115, %117 : vector<1x256xi1>
    %cst_44 = arith.constant 1.500000e+01 : f32
    %119 = vector.broadcast %cst_44 : f32 to vector<1x256xf32>
    %120 = arith.cmpf ole, %65, %119 : vector<1x256xf32>
    %121 = arith.andi %118, %120 : vector<1x256xi1>
    %cst_45 = arith.constant 0.000000e+00 : f32
    %122 = vector.broadcast %cst_45 : f32 to vector<1x256xf32>
    %123 = arith.select %121, %77, %122 : vector<1x256xi1>, vector<1x256xf32>
    %cst_46 = arith.constant 1.600000e+01 : f32
    %124 = vector.broadcast %cst_46 : f32 to vector<1x256xf32>
    %125 = arith.mulf %65, %124 : vector<1x256xf32>
    %126 = arith.addf %125, %74 : vector<1x256xf32>
    %127 = arith.fptosi %126 : vector<1x256xf32> to vector<1x256xi32>
    %128 = vector.broadcast %127 : vector<1x256xi32> to vector<256x256xi32>
    %129 = arith.cmpi eq, %10, %128 : vector<256x256xi32>
    %cst_47 = arith.constant 0.000000e+00 : f32
    %130 = vector.shape_cast %123 : vector<1x256xf32> to vector<1x256xf32>
    %131 = vector.broadcast %130 : vector<1x256xf32> to vector<256x256xf32>
    %132 = vector.broadcast %cst_47 : f32 to vector<256x256xf32>
    %133 = arith.select %129, %131, %132 : vector<256x256xi1>, vector<256x256xf32>
    %134 = arith.addf %110, %133 : vector<256x256xf32>
    %cst_48 = arith.constant 0.000000e+00 : f32
    %135 = vector.broadcast %cst_48 : f32 to vector<1x256xf32>
    %136 = arith.cmpf oge, %64, %135 : vector<1x256xf32>
    %cst_49 = arith.constant 1.500000e+01 : f32
    %137 = vector.broadcast %cst_49 : f32 to vector<1x256xf32>
    %138 = arith.cmpf ole, %64, %137 : vector<1x256xf32>
    %139 = arith.andi %136, %138 : vector<1x256xi1>
    %cst_50 = arith.constant 0.000000e+00 : f32
    %140 = vector.broadcast %cst_50 : f32 to vector<1x256xf32>
    %141 = arith.cmpf oge, %79, %140 : vector<1x256xf32>
    %142 = arith.andi %139, %141 : vector<1x256xi1>
    %cst_51 = arith.constant 1.500000e+01 : f32
    %143 = vector.broadcast %cst_51 : f32 to vector<1x256xf32>
    %144 = arith.cmpf ole, %79, %143 : vector<1x256xf32>
    %145 = arith.andi %142, %144 : vector<1x256xi1>
    %cst_52 = arith.constant 0.000000e+00 : f32
    %146 = vector.broadcast %cst_52 : f32 to vector<1x256xf32>
    %147 = arith.select %145, %82, %146 : vector<1x256xi1>, vector<1x256xf32>
    %cst_53 = arith.constant 1.600000e+01 : f32
    %148 = vector.broadcast %cst_53 : f32 to vector<1x256xf32>
    %149 = arith.mulf %79, %148 : vector<1x256xf32>
    %150 = arith.addf %149, %64 : vector<1x256xf32>
    %151 = arith.fptosi %150 : vector<1x256xf32> to vector<1x256xi32>
    %152 = vector.broadcast %151 : vector<1x256xi32> to vector<256x256xi32>
    %153 = arith.cmpi eq, %10, %152 : vector<256x256xi32>
    %cst_54 = arith.constant 0.000000e+00 : f32
    %154 = vector.shape_cast %147 : vector<1x256xf32> to vector<1x256xf32>
    %155 = vector.broadcast %154 : vector<1x256xf32> to vector<256x256xf32>
    %156 = vector.broadcast %cst_54 : f32 to vector<256x256xf32>
    %157 = arith.select %153, %155, %156 : vector<256x256xi1>, vector<256x256xf32>
    %158 = arith.addf %134, %157 : vector<256x256xf32>
    %cst_55 = arith.constant 0.000000e+00 : f32
    %159 = vector.broadcast %cst_55 : f32 to vector<1x256xf32>
    %160 = arith.cmpf oge, %84, %159 : vector<1x256xf32>
    %cst_56 = arith.constant 1.500000e+01 : f32
    %161 = vector.broadcast %cst_56 : f32 to vector<1x256xf32>
    %162 = arith.cmpf ole, %84, %161 : vector<1x256xf32>
    %163 = arith.andi %160, %162 : vector<1x256xi1>
    %cst_57 = arith.constant 0.000000e+00 : f32
    %164 = vector.broadcast %cst_57 : f32 to vector<1x256xf32>
    %165 = arith.cmpf oge, %86, %164 : vector<1x256xf32>
    %166 = arith.andi %163, %165 : vector<1x256xi1>
    %cst_58 = arith.constant 1.500000e+01 : f32
    %167 = vector.broadcast %cst_58 : f32 to vector<1x256xf32>
    %168 = arith.cmpf ole, %86, %167 : vector<1x256xf32>
    %169 = arith.andi %166, %168 : vector<1x256xi1>
    %cst_59 = arith.constant 0.000000e+00 : f32
    %170 = vector.broadcast %cst_59 : f32 to vector<1x256xf32>
    %171 = arith.select %169, %87, %170 : vector<1x256xi1>, vector<1x256xf32>
    %cst_60 = arith.constant 1.600000e+01 : f32
    %172 = vector.broadcast %cst_60 : f32 to vector<1x256xf32>
    %173 = arith.mulf %86, %172 : vector<1x256xf32>
    %174 = arith.addf %173, %84 : vector<1x256xf32>
    %175 = arith.fptosi %174 : vector<1x256xf32> to vector<1x256xi32>
    %176 = vector.broadcast %175 : vector<1x256xi32> to vector<256x256xi32>
    %177 = arith.cmpi eq, %10, %176 : vector<256x256xi32>
    %cst_61 = arith.constant 0.000000e+00 : f32
    %178 = vector.shape_cast %171 : vector<1x256xf32> to vector<1x256xf32>
    %179 = vector.broadcast %178 : vector<1x256xf32> to vector<256x256xf32>
    %180 = vector.broadcast %cst_61 : f32 to vector<256x256xf32>
    %181 = arith.select %177, %179, %180 : vector<256x256xi1>, vector<256x256xf32>
    %182 = arith.addf %158, %181 : vector<256x256xf32>
    %cst_62 = arith.constant dense<0.000000e+00> : vector<40x256xf32>
    %183 = tpu.matmul %27, %182, %cst_62 {dimension_numbers = #tpu.dot_dimension_numbers<[1], [0], [0], [1], [0, 0, 1, 1], [], []>} : vector<40x256xf32>, vector<256x256xf32>, vector<40x256xf32> -> vector<40x256xf32>
    %c1_63 = arith.constant 1 : index
    %c0_64 = arith.constant 0 : index
    %184 = memref.load %arg1[%c1_63, %c0_64] : memref<2x6xf32, #tpu.memory_space<smem>>
    %c1_65 = arith.constant 1 : index
    %c1_66 = arith.constant 1 : index
    %185 = memref.load %arg1[%c1_65, %c1_66] : memref<2x6xf32, #tpu.memory_space<smem>>
    %c1_67 = arith.constant 1 : index
    %c2_68 = arith.constant 2 : index
    %186 = memref.load %arg1[%c1_67, %c2_68] : memref<2x6xf32, #tpu.memory_space<smem>>
    %c1_69 = arith.constant 1 : index
    %c3_70 = arith.constant 3 : index
    %187 = memref.load %arg1[%c1_69, %c3_70] : memref<2x6xf32, #tpu.memory_space<smem>>
    %c1_71 = arith.constant 1 : index
    %c4_72 = arith.constant 4 : index
    %188 = memref.load %arg1[%c1_71, %c4_72] : memref<2x6xf32, #tpu.memory_space<smem>>
    %c1_73 = arith.constant 1 : index
    %c5_74 = arith.constant 5 : index
    %189 = memref.load %arg1[%c1_73, %c5_74] : memref<2x6xf32, #tpu.memory_space<smem>>
    %190 = vector.broadcast %184 : f32 to vector<1x256xf32>
    %191 = arith.mulf %190, %18 : vector<1x256xf32>
    %192 = vector.broadcast %185 : f32 to vector<1x256xf32>
    %193 = arith.mulf %192, %26 : vector<1x256xf32>
    %194 = arith.addf %191, %193 : vector<1x256xf32>
    %195 = vector.broadcast %186 : f32 to vector<1x256xf32>
    %196 = arith.addf %194, %195 : vector<1x256xf32>
    %197 = vector.broadcast %187 : f32 to vector<1x256xf32>
    %198 = arith.mulf %197, %18 : vector<1x256xf32>
    %199 = vector.broadcast %188 : f32 to vector<1x256xf32>
    %200 = arith.mulf %199, %26 : vector<1x256xf32>
    %201 = arith.addf %198, %200 : vector<1x256xf32>
    %202 = vector.broadcast %189 : f32 to vector<1x256xf32>
    %203 = arith.addf %201, %202 : vector<1x256xf32>
    %cst_75 = arith.constant 1.000000e+00 : f32
    %204 = vector.broadcast %cst_75 : f32 to vector<1x256xf32>
    %205 = arith.addf %196, %204 : vector<1x256xf32>
    %cst_76 = arith.constant 1.600000e+01 : f32
    %206 = vector.broadcast %cst_76 : f32 to vector<1x256xf32>
    %207 = arith.mulf %205, %206 : vector<1x256xf32>
    %cst_77 = arith.constant 1.000000e+00 : f32
    %208 = vector.broadcast %cst_77 : f32 to vector<1x256xf32>
    %209 = arith.subf %207, %208 : vector<1x256xf32>
    %cst_78 = arith.constant 5.000000e-01 : f32
    %210 = vector.broadcast %cst_78 : f32 to vector<1x256xf32>
    %211 = arith.mulf %209, %210 : vector<1x256xf32>
    %cst_79 = arith.constant 1.000000e+00 : f32
    %212 = vector.broadcast %cst_79 : f32 to vector<1x256xf32>
    %213 = arith.addf %203, %212 : vector<1x256xf32>
    %cst_80 = arith.constant 1.600000e+01 : f32
    %214 = vector.broadcast %cst_80 : f32 to vector<1x256xf32>
    %215 = arith.mulf %213, %214 : vector<1x256xf32>
    %cst_81 = arith.constant 1.000000e+00 : f32
    %216 = vector.broadcast %cst_81 : f32 to vector<1x256xf32>
    %217 = arith.subf %215, %216 : vector<1x256xf32>
    %cst_82 = arith.constant 5.000000e-01 : f32
    %218 = vector.broadcast %cst_82 : f32 to vector<1x256xf32>
    %219 = arith.mulf %217, %218 : vector<1x256xf32>
    %220 = math.floor %211 : vector<1x256xf32>
    %221 = math.floor %219 : vector<1x256xf32>
    %222 = arith.subf %211, %220 : vector<1x256xf32>
    %223 = arith.subf %219, %221 : vector<1x256xf32>
    %cst_83 = arith.constant 1.000000e+00 : f32
    %224 = vector.broadcast %cst_83 : f32 to vector<1x256xf32>
    %225 = arith.subf %224, %222 : vector<1x256xf32>
    %cst_84 = arith.constant 1.000000e+00 : f32
    %226 = vector.broadcast %cst_84 : f32 to vector<1x256xf32>
    %227 = arith.subf %226, %223 : vector<1x256xf32>
    %228 = arith.mulf %225, %227 : vector<1x256xf32>
    %cst_85 = arith.constant 1.000000e+00 : f32
    %229 = vector.broadcast %cst_85 : f32 to vector<1x256xf32>
    %230 = arith.addf %220, %229 : vector<1x256xf32>
    %cst_86 = arith.constant 1.000000e+00 : f32
    %231 = vector.broadcast %cst_86 : f32 to vector<1x256xf32>
    %232 = arith.subf %231, %223 : vector<1x256xf32>
    %233 = arith.mulf %222, %232 : vector<1x256xf32>
    %cst_87 = arith.constant 1.000000e+00 : f32
    %234 = vector.broadcast %cst_87 : f32 to vector<1x256xf32>
    %235 = arith.addf %221, %234 : vector<1x256xf32>
    %cst_88 = arith.constant 1.000000e+00 : f32
    %236 = vector.broadcast %cst_88 : f32 to vector<1x256xf32>
    %237 = arith.subf %236, %222 : vector<1x256xf32>
    %238 = arith.mulf %237, %223 : vector<1x256xf32>
    %cst_89 = arith.constant 1.000000e+00 : f32
    %239 = vector.broadcast %cst_89 : f32 to vector<1x256xf32>
    %240 = arith.addf %220, %239 : vector<1x256xf32>
    %cst_90 = arith.constant 1.000000e+00 : f32
    %241 = vector.broadcast %cst_90 : f32 to vector<1x256xf32>
    %242 = arith.addf %221, %241 : vector<1x256xf32>
    %243 = arith.mulf %222, %223 : vector<1x256xf32>
    %cst_91 = arith.constant 0.000000e+00 : f32
    %244 = vector.broadcast %cst_91 : f32 to vector<1x256xf32>
    %245 = arith.cmpf oge, %220, %244 : vector<1x256xf32>
    %cst_92 = arith.constant 1.500000e+01 : f32
    %246 = vector.broadcast %cst_92 : f32 to vector<1x256xf32>
    %247 = arith.cmpf ole, %220, %246 : vector<1x256xf32>
    %248 = arith.andi %245, %247 : vector<1x256xi1>
    %cst_93 = arith.constant 0.000000e+00 : f32
    %249 = vector.broadcast %cst_93 : f32 to vector<1x256xf32>
    %250 = arith.cmpf oge, %221, %249 : vector<1x256xf32>
    %251 = arith.andi %248, %250 : vector<1x256xi1>
    %cst_94 = arith.constant 1.500000e+01 : f32
    %252 = vector.broadcast %cst_94 : f32 to vector<1x256xf32>
    %253 = arith.cmpf ole, %221, %252 : vector<1x256xf32>
    %254 = arith.andi %251, %253 : vector<1x256xi1>
    %cst_95 = arith.constant 0.000000e+00 : f32
    %255 = vector.broadcast %cst_95 : f32 to vector<1x256xf32>
    %256 = arith.select %254, %228, %255 : vector<1x256xi1>, vector<1x256xf32>
    %cst_96 = arith.constant 1.600000e+01 : f32
    %257 = vector.broadcast %cst_96 : f32 to vector<1x256xf32>
    %258 = arith.mulf %221, %257 : vector<1x256xf32>
    %259 = arith.addf %258, %220 : vector<1x256xf32>
    %260 = arith.fptosi %259 : vector<1x256xf32> to vector<1x256xi32>
    %261 = vector.broadcast %260 : vector<1x256xi32> to vector<256x256xi32>
    %262 = arith.cmpi eq, %10, %261 : vector<256x256xi32>
    %cst_97 = arith.constant 0.000000e+00 : f32
    %263 = vector.shape_cast %256 : vector<1x256xf32> to vector<1x256xf32>
    %264 = vector.broadcast %263 : vector<1x256xf32> to vector<256x256xf32>
    %265 = vector.broadcast %cst_97 : f32 to vector<256x256xf32>
    %266 = arith.select %262, %264, %265 : vector<256x256xi1>, vector<256x256xf32>
    %cst_98 = arith.constant 0.000000e+00 : f32
    %267 = vector.broadcast %cst_98 : f32 to vector<1x256xf32>
    %268 = arith.cmpf oge, %230, %267 : vector<1x256xf32>
    %cst_99 = arith.constant 1.500000e+01 : f32
    %269 = vector.broadcast %cst_99 : f32 to vector<1x256xf32>
    %270 = arith.cmpf ole, %230, %269 : vector<1x256xf32>
    %271 = arith.andi %268, %270 : vector<1x256xi1>
    %cst_100 = arith.constant 0.000000e+00 : f32
    %272 = vector.broadcast %cst_100 : f32 to vector<1x256xf32>
    %273 = arith.cmpf oge, %221, %272 : vector<1x256xf32>
    %274 = arith.andi %271, %273 : vector<1x256xi1>
    %cst_101 = arith.constant 1.500000e+01 : f32
    %275 = vector.broadcast %cst_101 : f32 to vector<1x256xf32>
    %276 = arith.cmpf ole, %221, %275 : vector<1x256xf32>
    %277 = arith.andi %274, %276 : vector<1x256xi1>
    %cst_102 = arith.constant 0.000000e+00 : f32
    %278 = vector.broadcast %cst_102 : f32 to vector<1x256xf32>
    %279 = arith.select %277, %233, %278 : vector<1x256xi1>, vector<1x256xf32>
    %cst_103 = arith.constant 1.600000e+01 : f32
    %280 = vector.broadcast %cst_103 : f32 to vector<1x256xf32>
    %281 = arith.mulf %221, %280 : vector<1x256xf32>
    %282 = arith.addf %281, %230 : vector<1x256xf32>
    %283 = arith.fptosi %282 : vector<1x256xf32> to vector<1x256xi32>
    %284 = vector.broadcast %283 : vector<1x256xi32> to vector<256x256xi32>
    %285 = arith.cmpi eq, %10, %284 : vector<256x256xi32>
    %cst_104 = arith.constant 0.000000e+00 : f32
    %286 = vector.shape_cast %279 : vector<1x256xf32> to vector<1x256xf32>
    %287 = vector.broadcast %286 : vector<1x256xf32> to vector<256x256xf32>
    %288 = vector.broadcast %cst_104 : f32 to vector<256x256xf32>
    %289 = arith.select %285, %287, %288 : vector<256x256xi1>, vector<256x256xf32>
    %290 = arith.addf %266, %289 : vector<256x256xf32>
    %cst_105 = arith.constant 0.000000e+00 : f32
    %291 = vector.broadcast %cst_105 : f32 to vector<1x256xf32>
    %292 = arith.cmpf oge, %220, %291 : vector<1x256xf32>
    %cst_106 = arith.constant 1.500000e+01 : f32
    %293 = vector.broadcast %cst_106 : f32 to vector<1x256xf32>
    %294 = arith.cmpf ole, %220, %293 : vector<1x256xf32>
    %295 = arith.andi %292, %294 : vector<1x256xi1>
    %cst_107 = arith.constant 0.000000e+00 : f32
    %296 = vector.broadcast %cst_107 : f32 to vector<1x256xf32>
    %297 = arith.cmpf oge, %235, %296 : vector<1x256xf32>
    %298 = arith.andi %295, %297 : vector<1x256xi1>
    %cst_108 = arith.constant 1.500000e+01 : f32
    %299 = vector.broadcast %cst_108 : f32 to vector<1x256xf32>
    %300 = arith.cmpf ole, %235, %299 : vector<1x256xf32>
    %301 = arith.andi %298, %300 : vector<1x256xi1>
    %cst_109 = arith.constant 0.000000e+00 : f32
    %302 = vector.broadcast %cst_109 : f32 to vector<1x256xf32>
    %303 = arith.select %301, %238, %302 : vector<1x256xi1>, vector<1x256xf32>
    %cst_110 = arith.constant 1.600000e+01 : f32
    %304 = vector.broadcast %cst_110 : f32 to vector<1x256xf32>
    %305 = arith.mulf %235, %304 : vector<1x256xf32>
    %306 = arith.addf %305, %220 : vector<1x256xf32>
    %307 = arith.fptosi %306 : vector<1x256xf32> to vector<1x256xi32>
    %308 = vector.broadcast %307 : vector<1x256xi32> to vector<256x256xi32>
    %309 = arith.cmpi eq, %10, %308 : vector<256x256xi32>
    %cst_111 = arith.constant 0.000000e+00 : f32
    %310 = vector.shape_cast %303 : vector<1x256xf32> to vector<1x256xf32>
    %311 = vector.broadcast %310 : vector<1x256xf32> to vector<256x256xf32>
    %312 = vector.broadcast %cst_111 : f32 to vector<256x256xf32>
    %313 = arith.select %309, %311, %312 : vector<256x256xi1>, vector<256x256xf32>
    %314 = arith.addf %290, %313 : vector<256x256xf32>
    %cst_112 = arith.constant 0.000000e+00 : f32
    %315 = vector.broadcast %cst_112 : f32 to vector<1x256xf32>
    %316 = arith.cmpf oge, %240, %315 : vector<1x256xf32>
    %cst_113 = arith.constant 1.500000e+01 : f32
    %317 = vector.broadcast %cst_113 : f32 to vector<1x256xf32>
    %318 = arith.cmpf ole, %240, %317 : vector<1x256xf32>
    %319 = arith.andi %316, %318 : vector<1x256xi1>
    %cst_114 = arith.constant 0.000000e+00 : f32
    %320 = vector.broadcast %cst_114 : f32 to vector<1x256xf32>
    %321 = arith.cmpf oge, %242, %320 : vector<1x256xf32>
    %322 = arith.andi %319, %321 : vector<1x256xi1>
    %cst_115 = arith.constant 1.500000e+01 : f32
    %323 = vector.broadcast %cst_115 : f32 to vector<1x256xf32>
    %324 = arith.cmpf ole, %242, %323 : vector<1x256xf32>
    %325 = arith.andi %322, %324 : vector<1x256xi1>
    %cst_116 = arith.constant 0.000000e+00 : f32
    %326 = vector.broadcast %cst_116 : f32 to vector<1x256xf32>
    %327 = arith.select %325, %243, %326 : vector<1x256xi1>, vector<1x256xf32>
    %cst_117 = arith.constant 1.600000e+01 : f32
    %328 = vector.broadcast %cst_117 : f32 to vector<1x256xf32>
    %329 = arith.mulf %242, %328 : vector<1x256xf32>
    %330 = arith.addf %329, %240 : vector<1x256xf32>
    %331 = arith.fptosi %330 : vector<1x256xf32> to vector<1x256xi32>
    %332 = vector.broadcast %331 : vector<1x256xi32> to vector<256x256xi32>
    %333 = arith.cmpi eq, %10, %332 : vector<256x256xi32>
    %cst_118 = arith.constant 0.000000e+00 : f32
    %334 = vector.shape_cast %327 : vector<1x256xf32> to vector<1x256xf32>
    %335 = vector.broadcast %334 : vector<1x256xf32> to vector<256x256xf32>
    %336 = vector.broadcast %cst_118 : f32 to vector<256x256xf32>
    %337 = arith.select %333, %335, %336 : vector<256x256xi1>, vector<256x256xf32>
    %338 = arith.addf %314, %337 : vector<256x256xf32>
    %cst_119 = arith.constant dense<0.000000e+00> : vector<40x256xf32>
    %339 = tpu.matmul %183, %338, %cst_119 {dimension_numbers = #tpu.dot_dimension_numbers<[1], [0], [0], [1], [0, 0, 1, 1], [], []>} : vector<40x256xf32>, vector<256x256xf32>, vector<40x256xf32> -> vector<40x256xf32>
    %c0_120 = arith.constant 0 : index
    %c0_121 = arith.constant 0 : index
    %340 = vector.load %arg3[%c0_120, %c0_121] : memref<40x256xf32, #tpu.memory_space<vmem>>, vector<40x256xf32>
    tpu.vector_store %arg3[%c0_120, %c0_121], %339 {strides = array<i32>} : memref<40x256xf32, #tpu.memory_space<vmem>>, vector<40x256xf32>,
    return
  }
  func.func @transform_0(%arg0: i32) -> (i32, i32) {
    %c0_i32 = arith.constant 0 : i32
    %c0_i32_0 = arith.constant 0 : i32
    %c0_i32_1 = arith.constant 0 : i32
    return %c0_i32, %c0_i32_0 : i32, i32
  }
  func.func @transform_1(%arg0: i32) -> (i32, i32) {
    %c0_i32 = arith.constant 0 : i32
    %c0_i32_0 = arith.constant 0 : i32
    %c0_i32_1 = arith.constant 0 : i32
    return %c0_i32, %c0_i32_0 : i32, i32
  }
  func.func @transform_2(%arg0: i32) -> (i32, i32) {
    %c0_i32 = arith.constant 0 : i32
    %c0_i32_0 = arith.constant 0 : i32
    %c0_i32_1 = arith.constant 0 : i32
    return %c0_i32, %c0_i32_0 : i32, i32
  }
}

</mosaic_0001>

<llo_original>
// kernel: transform_apply.1
$region0: #{transform_apply.1}
  #allocation0 [shape = 'u32[]', space=smem, size = 0x4, offset = 0x4, fixed_abs, tag = 'smem constant byte address 0x4 - core index']
  #allocation1 [shape = 'u32[144,128]{1,0:T(1,128)}', space=vmem, size = 0x12000, scoped, tag = 'internal scratch']
  %s0 = inlined_call_operand.vmem [shape: f32[2,6], index: 0, kind: input, shape index: {}]
  %s1 = inlined_call_operand.vmem [shape: f32[40,256], index: 1, kind: input, shape index: {}]
  %s2 = inlined_call_operand.vmem [shape: f32[40,256], index: 2, kind: output, shape index: {}]
  %s3 = sld [smem:[#allocation0]]
  $region22: #{transform_apply.1} parent=0
    _
  %s5 = ssub.s32 1, %s3
  %s6 = scalar_select 0, %s5, %s3
  $region1: #{transform_apply.1} parent=0
    #allocation2 [shape = 'u8[1024]{0}', space=smem, size = 0x400, scoped, tag = 'input window, operand 0, single buffered']
    #allocation3 [shape = 's32[1]{0}', space=sflag, size = 0x4, scoped, tag = 'scoped memory for transform_apply.1']
    %7 = vsyncpa [#allocation3], 0
    // Predicated region
    $region2: #{transform_apply.1} parent=1 // pred_check
      _
    $region3: #{transform_apply.1} parent=1 // pred_check_branch
      %9 = sbr.rel (0) target = $region5
    $region4: #{transform_apply.1} parent=1 // pred_region
      %s11 = ssub.s32 32, 32
      %12 = vsyncadd [#allocation3], %s11
      %s14 = sshll.u32 %s0, 4
      %s15 = int_to_ptr.vmem [resolvable:$true] %s14
      %17 = dma.vmem_to_smem %s15, 32, [#allocation2], [#allocation3]
    $region5: #{transform_apply.1} parent=1 // pred_fallthru
      _
    // Predicated region
    $region6: #{transform_apply.1} parent=1 // pred_check
      _
    $region7: #{transform_apply.1} parent=1 // pred_check_branch
      %19 = sbr.rel (0) target = $region9
    $region8: #{transform_apply.1} parent=1 // pred_region
      _
    $region9: #{transform_apply.1} parent=1 // pred_fallthru
      _
    // Predicated region
    $region10: #{transform_apply.1} parent=1 // pred_check
      _
    $region11: #{transform_apply.1} parent=1 // pred_check_branch
      %21 = sbr.rel (0) target = $region13
    $region12: #{transform_apply.1} parent=1 // pred_region
      %22 = dma.done [#allocation3], 32
    $region13: #{transform_apply.1} parent=1 // pred_fallthru
      _
    %23 = sfence
    %v24 = vlaneseq
    %v25 = vand.u32 %v24, 127
    %v26 = vadd.s32 %v25, 128
    %v27 = vcvt.s32.f32 %v25
    %v28 = vcvt.s32.f32 %v26
    %v29 = vadd.f32 %v27, 0.5
    %v30 = vadd.f32 %v28, 0.5
    %v31 = vmul.f32 %v29, 0.0625
    %v32 = vmul.f32 %v30, 0.0625
    %v33 = vfloor.f32 %v31
    %v34 = vfloor.f32 %v32
    %v35 = vmul.f32 %v33, 16.0
    %v36 = vmul.f32 %v34, 16.0
    %v37 = vsub.f32 %v27, %v35
    %v38 = vsub.f32 %v28, %v36
    %v39 = vlaneseq
    %v40 = vshrl.u32 %v39, 7
    %v41 = vadd.s32 %v40, 8
    %v42 = vadd.s32 %v40, 16
    %v43 = vadd.s32 %v40, 24
    %v44 = vadd.s32 %v40, 32
    %v45 = vadd.s32 %v40, 40
    %v46 = vadd.s32 %v40, 48
    %v47 = vadd.s32 %v40, 56
    %v48 = vadd.s32 %v40, 64
    %v49 = vadd.s32 %v40, 72
    %v50 = vadd.s32 %v40, 80
    %v51 = vadd.s32 %v40, 88
    %v52 = vadd.s32 %v40, 96
    %v53 = vadd.s32 %v40, 104
    %v54 = vadd.s32 %v40, 112
    %v55 = vadd.s32 %v40, 120
    %v56 = vadd.s32 %v40, 128
    %v57 = vadd.s32 %v40, 136
    %v58 = vadd.s32 %v40, 144
    %v59 = vadd.s32 %v40, 152
    %v60 = vadd.s32 %v40, 160
    %v61 = vadd.s32 %v40, 168
    %v62 = vadd.s32 %v40, 176
    %v63 = vadd.s32 %v40, 184
    %v64 = vadd.s32 %v40, 192
    %v65 = vadd.s32 %v40, 200
    %v66 = vadd.s32 %v40, 208
    %v67 = vadd.s32 %v40, 216
    %v68 = vadd.s32 %v40, 224
    %v69 = vadd.s32 %v40, 232
    %v70 = vadd.s32 %v40, 240
    %v71 = vadd.s32 %v40, 248
    %v72 = vmul.f32 %v37, 2.0
    %v73 = vmul.f32 %v38, 2.0
    %v74 = vadd.f32 %v72, 1.0
    %v75 = vadd.f32 %v73, 1.0
    %v76 = vrcp.pop 16.0
    %v77 = vmul.f32 %v74, %v76
    %v78 = vmul.f32 %v75, %v76
    %v79 = vsub.f32 %v77, 1.0
    %v80 = vsub.f32 %v78, 1.0
    %v81 = vmul.f32 %v33, 2.0
    %v82 = vmul.f32 %v34, 2.0
    %v83 = vadd.f32 %v81, 1.0
    %v84 = vadd.f32 %v82, 1.0
    %v85 = vmul.f32 %v83, %v76
    %v86 = vmul.f32 %v84, %v76
    %v87 = vsub.f32 %v85, 1.0
    %v88 = vsub.f32 %v86, 1.0
    %v89 = vld [vmem:[%s1] sm:$0xff]
    %v90 = vld [vmem:[%s1 + $0x8] sm:$0xff]
    %v91 = vld [vmem:[%s1 + $0x10] sm:$0xff]
    %v92 = vld [vmem:[%s1 + $0x18] sm:$0xff]
    %v93 = vld [vmem:[%s1 + $0x20] sm:$0xff]
    %v94 = vld [vmem:[%s1 + $0x28] sm:$0xff]
    %v95 = vld [vmem:[%s1 + $0x30] sm:$0xff]
    %v96 = vld [vmem:[%s1 + $0x38] sm:$0xff]
    %v97 = vld [vmem:[%s1 + $0x40] sm:$0xff]
    %v98 = vld [vmem:[%s1 + $0x48] sm:$0xff]
    %s99 = sld [smem:[#allocation2]]
    %s100 = sld [smem:[#allocation2 + $0x1]]
    %s101 = sld [smem:[#allocation2 + $0x2]]
    %s102 = sld [smem:[#allocation2 + $0x3]]
    %s103 = sld [smem:[#allocation2 + $0x4]]
    %s104 = sld [smem:[#allocation2 + $0x5]]
    %v105 = vstv %s99
    %v106 = vmul.f32 %v105, %v79
    %v107 = vmul.f32 %v105, %v80
    %v108 = vstv %s100
    %v109 = vmul.f32 %v108, %v87
    %v110 = vmul.f32 %v108, %v88
    %v111 = vadd.f32 %v106, %v109
    %v112 = vadd.f32 %v107, %v110
    %v113 = vstv %s101
    %v114 = vadd.f32 %v111, %v113
    %v115 = vadd.f32 %v112, %v113
    %v116 = vstv %s102
    %v117 = vmul.f32 %v116, %v79
    %v118 = vmul.f32 %v116, %v80
    %v119 = vstv %s103
    %v120 = vmul.f32 %v119, %v87
    %v121 = vmul.f32 %v119, %v88
    %v122 = vadd.f32 %v117, %v120
    %v123 = vadd.f32 %v118, %v121
    %v124 = vstv %s104
    %v125 = vadd.f32 %v122, %v124
    %v126 = vadd.f32 %v123, %v124
    %v127 = vadd.f32 %v114, 1.0
    %v128 = vadd.f32 %v115, 1.0
    %v129 = vmul.f32 %v127, 16.0
    %v130 = vmul.f32 %v128, 16.0
    %v131 = vsub.f32 %v129, 1.0
    %v132 = vsub.f32 %v130, 1.0
    %v133 = vmul.f32 %v131, 0.5
    %v134 = vmul.f32 %v132, 0.5
    %v135 = vadd.f32 %v125, 1.0
    %v136 = vadd.f32 %v126, 1.0
    %v137 = vmul.f32 %v135, 16.0
    %v138 = vmul.f32 %v136, 16.0
    %v139 = vsub.f32 %v137, 1.0
    %v140 = vsub.f32 %v138, 1.0
    %v141 = vmul.f32 %v139, 0.5
    %v142 = vmul.f32 %v140, 0.5
    %v143 = vfloor.f32 %v133
    %v144 = vfloor.f32 %v134
    %v145 = vfloor.f32 %v141
    %v146 = vfloor.f32 %v142
    %v147 = vsub.f32 %v133, %v143
    %v148 = vsub.f32 %v134, %v144
    %v149 = vsub.f32 %v141, %v145
    %v150 = vsub.f32 %v142, %v146
    %v151 = vsub.f32 1.0, %v147
    %v152 = vsub.f32 1.0, %v148
    %v153 = vsub.f32 1.0, %v149
    %v154 = vsub.f32 1.0, %v150
    %v155 = vmul.f32 %v151, %v153
    %v156 = vmul.f32 %v152, %v154
    %v157 = vadd.f32 %v143, 1.0
    %v158 = vadd.f32 %v144, 1.0
    %v159 = vmul.f32 %v147, %v153
    %v160 = vmul.f32 %v148, %v154
    %v161 = vadd.f32 %v145, 1.0
    %v162 = vadd.f32 %v146, 1.0
    %v163 = vmul.f32 %v151, %v149
    %v164 = vmul.f32 %v152, %v150
    %v165 = vmul.f32 %v147, %v149
    %v166 = vmul.f32 %v148, %v150
    %vm167 = vcmp.ge.f32.partialorder %v143, 0.0
    %vm168 = vcmp.ge.f32.partialorder %v144, 0.0
    %vm169 = vcmp.le.f32.partialorder %v143, 15.0
    %vm170 = vcmp.le.f32.partialorder %v144, 15.0
    %vm171 = vmand %vm167, %vm169
    %vm172 = vmand %vm168, %vm170
    %vm173 = vcmp.ge.f32.partialorder %v145, 0.0
    %vm174 = vcmp.ge.f32.partialorder %v146, 0.0
    %vm175 = vmand %vm171, %vm173
    %vm176 = vmand %vm172, %vm174
    %vm177 = vcmp.le.f32.partialorder %v145, 15.0
    %vm178 = vcmp.le.f32.partialorder %v146, 15.0
    %vm179 = vmand %vm175, %vm177
    %vm180 = vmand %vm176, %vm178
    %v181 = vsel %vm179, %v155, 0.0
    %v182 = vsel %vm180, %v156, 0.0
    %v183 = vmul.f32 %v145, 16.0
    %v184 = vmul.f32 %v146, 16.0
    %v185 = vadd.f32 %v183, %v143
    %v186 = vadd.f32 %v184, %v144
    %v187 = vcvt.f32.s32.to.zero.pseudo %v185
    %v188 = vcvt.f32.s32.to.zero.pseudo %v186
    %vm189 = vcmp.eq.s32.totalorder %v40, %v187
    %vm190 = vcmp.eq.s32.totalorder %v40, %v188
    %vm191 = vcmp.eq.s32.totalorder %v41, %v187
    %vm192 = vcmp.eq.s32.totalorder %v41, %v188
    %vm193 = vcmp.eq.s32.totalorder %v42, %v187
    %vm194 = vcmp.eq.s32.totalorder %v42, %v188
    %vm195 = vcmp.eq.s32.totalorder %v43, %v187
    %vm196 = vcmp.eq.s32.totalorder %v43, %v188
    %vm197 = vcmp.eq.s32.totalorder %v44, %v187
    %vm198 = vcmp.eq.s32.totalorder %v44, %v188
    %vm199 = vcmp.eq.s32.totalorder %v45, %v187
    %vm200 = vcmp.eq.s32.totalorder %v45, %v188
    %vm201 = vcmp.eq.s32.totalorder %v46, %v187
    %vm202 = vcmp.eq.s32.totalorder %v46, %v188
    %vm203 = vcmp.eq.s32.totalorder %v47, %v187
    %vm204 = vcmp.eq.s32.totalorder %v47, %v188
    %vm205 = vcmp.eq.s32.totalorder %v48, %v187
    %vm206 = vcmp.eq.s32.totalorder %v48, %v188
    %vm207 = vcmp.eq.s32.totalorder %v49, %v187
    %vm208 = vcmp.eq.s32.totalorder %v49, %v188
    %vm209 = vcmp.eq.s32.totalorder %v50, %v187
    %vm210 = vcmp.eq.s32.totalorder %v50, %v188
    %vm211 = vcmp.eq.s32.totalorder %v51, %v187
    %vm212 = vcmp.eq.s32.totalorder %v51, %v188
    %vm213 = vcmp.eq.s32.totalorder %v52, %v187
    %vm214 = vcmp.eq.s32.totalorder %v52, %v188
    %vm215 = vcmp.eq.s32.totalorder %v53, %v187
    %vm216 = vcmp.eq.s32.totalorder %v53, %v188
    %vm217 = vcmp.eq.s32.totalorder %v54, %v187
    %vm218 = vcmp.eq.s32.totalorder %v54, %v188
    %vm219 = vcmp.eq.s32.totalorder %v55, %v187
    %vm220 = vcmp.eq.s32.totalorder %v55, %v188
    %vm221 = vcmp.eq.s32.totalorder %v56, %v187
    %vm222 = vcmp.eq.s32.totalorder %v56, %v188
    %vm223 = vcmp.eq.s32.totalorder %v57, %v187
    %vm224 = vcmp.eq.s32.totalorder %v57, %v188
    %vm225 = vcmp.eq.s32.totalorder %v58, %v187
    %vm226 = vcmp.eq.s32.totalorder %v58, %v188
    %vm227 = vcmp.eq.s32.totalorder %v59, %v187
    %vm228 = vcmp.eq.s32.totalorder %v59, %v188
    %vm229 = vcmp.eq.s32.totalorder %v60, %v187
    %vm230 = vcmp.eq.s32.totalorder %v60, %v188
    %vm231 = vcmp.eq.s32.totalorder %v61, %v187
    %vm232 = vcmp.eq.s32.totalorder %v61, %v188
    %vm233 = vcmp.eq.s32.totalorder %v62, %v187
    %vm234 = vcmp.eq.s32.totalorder %v62, %v188
    %vm235 = vcmp.eq.s32.totalorder %v63, %v187
    %vm236 = vcmp.eq.s32.totalorder %v63, %v188
    %vm237 = vcmp.eq.s32.totalorder %v64, %v187
    %vm238 = vcmp.eq.s32.totalorder %v64, %v188
    %vm239 = vcmp.eq.s32.totalorder %v65, %v187
    %vm240 = vcmp.eq.s32.totalorder %v65, %v188
    %vm241 = vcmp.eq.s32.totalorder %v66, %v187
    %vm242 = vcmp.eq.s32.totalorder %v66, %v188
    %vm243 = vcmp.eq.s32.totalorder %v67, %v187
    %vm244 = vcmp.eq.s32.totalorder %v67, %v188
    %vm245 = vcmp.eq.s32.totalorder %v68, %v187
    %vm246 = vcmp.eq.s32.totalorder %v68, %v188
    %vm247 = vcmp.eq.s32.totalorder %v69, %v187
    %vm248 = vcmp.eq.s32.totalorder %v69, %v188
    %vm249 = vcmp.eq.s32.totalorder %v70, %v187
    %vm250 = vcmp.eq.s32.totalorder %v70, %v188
    %vm251 = vcmp.eq.s32.totalorder %v71, %v187
    %vm252 = vcmp.eq.s32.totalorder %v71, %v188
    %v253 = vsel %vm189, %v181, 0.0
    %v254 = vsel %vm190, %v182, 0.0
    %v255 = vsel %vm191, %v181, 0.0
    %v256 = vsel %vm192, %v182, 0.0
    %v257 = vsel %vm193, %v181, 0.0
    %v258 = vsel %vm194, %v182, 0.0
    %v259 = vsel %vm195, %v181, 0.0
    %v260 = vsel %vm196, %v182, 0.0
    %v261 = vsel %vm197, %v181, 0.0
    %v262 = vsel %vm198, %v182, 0.0
    %v263 = vsel %vm199, %v181, 0.0
    %v264 = vsel %vm200, %v182, 0.0
    %v265 = vsel %vm201, %v181, 0.0
    %v266 = vsel %vm202, %v182, 0.0
    %v267 = vsel %vm203, %v181, 0.0
    %v268 = vsel %vm204, %v182, 0.0
    %v269 = vsel %vm205, %v181, 0.0
    %v270 = vsel %vm206, %v182, 0.0
    %v271 = vsel %vm207, %v181, 0.0
    %v272 = vsel %vm208, %v182, 0.0
    %v273 = vsel %vm209, %v181, 0.0
    %v274 = vsel %vm210, %v182, 0.0
    %v275 = vsel %vm211, %v181, 0.0
    %v276 = vsel %vm212, %v182, 0.0
    %v277 = vsel %vm213, %v181, 0.0
    %v278 = vsel %vm214, %v182, 0.0
    %v279 = vsel %vm215, %v181, 0.0
    %v280 = vsel %vm216, %v182, 0.0
    %v281 = vsel %vm217, %v181, 0.0
    %v282 = vsel %vm218, %v182, 0.0
    %v283 = vsel %vm219, %v181, 0.0
    %v284 = vsel %vm220, %v182, 0.0
    %v285 = vsel %vm221, %v181, 0.0
    %v286 = vsel %vm222, %v182, 0.0
    %v287 = vsel %vm223, %v181, 0.0
    %v288 = vsel %vm224, %v182, 0.0
    %v289 = vsel %vm225, %v181, 0.0
    %v290 = vsel %vm226, %v182, 0.0
    %v291 = vsel %vm227, %v181, 0.0
    %v292 = vsel %vm228, %v182, 0.0
    %v293 = vsel %vm229, %v181, 0.0
    %v294 = vsel %vm230, %v182, 0.0
    %v295 = vsel %vm231, %v181, 0.0
    %v296 = vsel %vm232, %v182, 0.0
    %v297 = vsel %vm233, %v181, 0.0
    %v298 = vsel %vm234, %v182, 0.0
    %v299 = vsel %vm235, %v181, 0.0
    %v300 = vsel %vm236, %v182, 0.0
    %v301 = vsel %vm237, %v181, 0.0
    %v302 = vsel %vm238, %v182, 0.0
    %v303 = vsel %vm239, %v181, 0.0
    %v304 = vsel %vm240, %v182, 0.0
    %v305 = vsel %vm241, %v181, 0.0
    %v306 = vsel %vm242, %v182, 0.0
    %v307 = vsel %vm243, %v181, 0.0
    %v308 = vsel %vm244, %v182, 0.0
    %v309 = vsel %vm245, %v181, 0.0
    %v310 = vsel %vm246, %v182, 0.0
    %v311 = vsel %vm247, %v181, 0.0
    %v312 = vsel %vm248, %v182, 0.0
    %v313 = vsel %vm249, %v181, 0.0
    %v314 = vsel %vm250, %v182, 0.0
    %v315 = vsel %vm251, %v181, 0.0
    %v316 = vsel %vm252, %v182, 0.0
    %vm317 = vcmp.ge.f32.partialorder %v157, 0.0
    %vm318 = vcmp.ge.f32.partialorder %v158, 0.0
    %vm319 = vcmp.le.f32.partialorder %v157, 15.0
    %vm320 = vcmp.le.f32.partialorder %v158, 15.0
    %vm321 = vmand %vm317, %vm319
    %vm322 = vmand %vm318, %vm320
    %vm323 = vmand %vm321, %vm173
    %vm324 = vmand %vm322, %vm174
    %vm325 = vmand %vm323, %vm177
    %vm326 = vmand %vm324, %vm178
    %v327 = vsel %vm325, %v159, 0.0
    %v328 = vsel %vm326, %v160, 0.0
    %v329 = vadd.f32 %v183, %v157
    %v330 = vadd.f32 %v184, %v158
    %v331 = vcvt.f32.s32.to.zero.pseudo %v329
    %v332 = vcvt.f32.s32.to.zero.pseudo %v330
    %vm333 = vcmp.eq.s32.totalorder %v40, %v331
    %vm334 = vcmp.eq.s32.totalorder %v40, %v332
    %vm335 = vcmp.eq.s32.totalorder %v41, %v331
    %vm336 = vcmp.eq.s32.totalorder %v41, %v332
    %vm337 = vcmp.eq.s32.totalorder %v42, %v331
    %vm338 = vcmp.eq.s32.totalorder %v42, %v332
    %vm339 = vcmp.eq.s32.totalorder %v43, %v331
    %vm340 = vcmp.eq.s32.totalorder %v43, %v332
    %vm341 = vcmp.eq.s32.totalorder %v44, %v331
    %vm342 = vcmp.eq.s32.totalorder %v44, %v332
    %vm343 = vcmp.eq.s32.totalorder %v45, %v331
    %vm344 = vcmp.eq.s32.totalorder %v45, %v332
    %vm345 = vcmp.eq.s32.totalorder %v46, %v331
    %vm346 = vcmp.eq.s32.totalorder %v46, %v332
    %vm347 = vcmp.eq.s32.totalorder %v47, %v331
    %vm348 = vcmp.eq.s32.totalorder %v47, %v332
    %vm349 = vcmp.eq.s32.totalorder %v48, %v331
    %vm350 = vcmp.eq.s32.totalorder %v48, %v332
    %vm351 = vcmp.eq.s32.totalorder %v49, %v331
    %vm352 = vcmp.eq.s32.totalorder %v49, %v332
    %vm353 = vcmp.eq.s32.totalorder %v50, %v331
    %vm354 = vcmp.eq.s32.totalorder %v50, %v332
    %vm355 = vcmp.eq.s32.totalorder %v51, %v331
    %vm356 = vcmp.eq.s32.totalorder %v51, %v332
    %vm357 = vcmp.eq.s32.totalorder %v52, %v331
    %vm358 = vcmp.eq.s32.totalorder %v52, %v332
    %vm359 = vcmp.eq.s32.totalorder %v53, %v331
    %vm360 = vcmp.eq.s32.totalorder %v53, %v332
    %vm361 = vcmp.eq.s32.totalorder %v54, %v331
    %vm362 = vcmp.eq.s32.totalorder %v54, %v332
    %vm363 = vcmp.eq.s32.totalorder %v55, %v331
    %vm364 = vcmp.eq.s32.totalorder %v55, %v332
    %vm365 = vcmp.eq.s32.totalorder %v56, %v331
    %vm366 = vcmp.eq.s32.totalorder %v56, %v332
    %vm367 = vcmp.eq.s32.totalorder %v57, %v331
    %vm368 = vcmp.eq.s32.totalorder %v57, %v332
    %vm369 = vcmp.eq.s32.totalorder %v58, %v331
    %vm370 = vcmp.eq.s32.totalorder %v58, %v332
    %vm371 = vcmp.eq.s32.totalorder %v59, %v331
    %vm372 = vcmp.eq.s32.totalorder %v59, %v332
    %vm373 = vcmp.eq.s32.totalorder %v60, %v331
    %vm374 = vcmp.eq.s32.totalorder %v60, %v332
    %vm375 = vcmp.eq.s32.totalorder %v61, %v331
    %vm376 = vcmp.eq.s32.totalorder %v61, %v332
    %vm377 = vcmp.eq.s32.totalorder %v62, %v331
    %vm378 = vcmp.eq.s32.totalorder %v62, %v332
    %vm379 = vcmp.eq.s32.totalorder %v63, %v331
    %vm380 = vcmp.eq.s32.totalorder %v63, %v332
    %vm381 = vcmp.eq.s32.totalorder %v64, %v331
    %vm382 = vcmp.eq.s32.totalorder %v64, %v332
    %vm383 = vcmp.eq.s32.totalorder %v65, %v331
    %vm384 = vcmp.eq.s32.totalorder %v65, %v332
    %vm385 = vcmp.eq.s32.totalorder %v66, %v331
    %vm386 = vcmp.eq.s32.totalorder %v66, %v332
    %vm387 = vcmp.eq.s32.totalorder %v67, %v331
    %vm388 = vcmp.eq.s32.totalorder %v67, %v332
    %vm389 = vcmp.eq.s32.totalorder %v68, %v331
    %vm390 = vcmp.eq.s32.totalorder %v68, %v332
    %vm391 = vcmp.eq.s32.totalorder %v69, %v331
    %vm392 = vcmp.eq.s32.totalorder %v69, %v332
    %vm393 = vcmp.eq.s32.totalorder %v70, %v331
    %vm394 = vcmp.eq.s32.totalorder %v70, %v332
    %vm395 = vcmp.eq.s32.totalorder %v71, %v331
    %vm396 = vcmp.eq.s32.totalorder %v71, %v332
    %v397 = vsel %vm333, %v327, 0.0
    %v398 = vsel %vm334, %v328, 0.0
    %v399 = vsel %vm335, %v327, 0.0
    %v400 = vsel %vm336, %v328, 0.0
    %v401 = vsel %vm337, %v327, 0.0
    %v402 = vsel %vm338, %v328, 0.0
    %v403 = vsel %vm339, %v327, 0.0
    %v404 = vsel %vm340, %v328, 0.0
    %v405 = vsel %vm341, %v327, 0.0
    %v406 = vsel %vm342, %v328, 0.0
    %v407 = vsel %vm343, %v327, 0.0
    %v408 = vsel %vm344, %v328, 0.0
    %v409 = vsel %vm345, %v327, 0.0
    %v410 = vsel %vm346, %v328, 0.0
    %v411 = vsel %vm347, %v327, 0.0
    %v412 = vsel %vm348, %v328, 0.0
    %v413 = vsel %vm349, %v327, 0.0
    %v414 = vsel %vm350, %v328, 0.0
    %v415 = vsel %vm351, %v327, 0.0
    %v416 = vsel %vm352, %v328, 0.0
    %v417 = vsel %vm353, %v327, 0.0
    %v418 = vsel %vm354, %v328, 0.0
    %v419 = vsel %vm355, %v327, 0.0
    %v420 = vsel %vm356, %v328, 0.0
    %v421 = vsel %vm357, %v327, 0.0
    %v422 = vsel %vm358, %v328, 0.0
    %v423 = vsel %vm359, %v327, 0.0
    %v424 = vsel %vm360, %v328, 0.0
    %v425 = vsel %vm361, %v327, 0.0
    %v426 = vsel %vm362, %v328, 0.0
    %v427 = vsel %vm363, %v327, 0.0
    %v428 = vsel %vm364, %v328, 0.0
    %v429 = vsel %vm365, %v327, 0.0
    %v430 = vsel %vm366, %v328, 0.0
    %v431 = vsel %vm367, %v327, 0.0
    %v432 = vsel %vm368, %v328, 0.0
    %v433 = vsel %vm369, %v327, 0.0
    %v434 = vsel %vm370, %v328, 0.0
    %v435 = vsel %vm371, %v327, 0.0
    %v436 = vsel %vm372, %v328, 0.0
    %v437 = vsel %vm373, %v327, 0.0
    %v438 = vsel %vm374, %v328, 0.0
    %v439 = vsel %vm375, %v327, 0.0
    %v440 = vsel %vm376, %v328, 0.0
    %v441 = vsel %vm377, %v327, 0.0
    %v442 = vsel %vm378, %v328, 0.0
    %v443 = vsel %vm379, %v327, 0.0
    %v444 = vsel %vm380, %v328, 0.0
    %v445 = vsel %vm381, %v327, 0.0
    %v446 = vsel %vm382, %v328, 0.0
    %v447 = vsel %vm383, %v327, 0.0
    %v448 = vsel %vm384, %v328, 0.0
    %v449 = vsel %vm385, %v327, 0.0
    %v450 = vsel %vm386, %v328, 0.0
    %v451 = vsel %vm387, %v327, 0.0
    %v452 = vsel %vm388, %v328, 0.0
    %v453 = vsel %vm389, %v327, 0.0
    %v454 = vsel %vm390, %v328, 0.0
    %v455 = vsel %vm391, %v327, 0.0
    %v456 = vsel %vm392, %v328, 0.0
    %v457 = vsel %vm393, %v327, 0.0
    %v458 = vsel %vm394, %v328, 0.0
    %v459 = vsel %vm395, %v327, 0.0
    %v460 = vsel %vm396, %v328, 0.0
    %v461 = vadd.f32 %v253, %v397
    %v462 = vadd.f32 %v254, %v398
    %v463 = vadd.f32 %v255, %v399
    %v464 = vadd.f32 %v256, %v400
    %v465 = vadd.f32 %v257, %v401
    %v466 = vadd.f32 %v258, %v402
    %v467 = vadd.f32 %v259, %v403
    %v468 = vadd.f32 %v260, %v404
    %v469 = vadd.f32 %v261, %v405
    %v470 = vadd.f32 %v262, %v406
    %v471 = vadd.f32 %v263, %v407
    %v472 = vadd.f32 %v264, %v408
    %v473 = vadd.f32 %v265, %v409
    %v474 = vadd.f32 %v266, %v410
    %v475 = vadd.f32 %v267, %v411
    %v476 = vadd.f32 %v268, %v412
    %v477 = vadd.f32 %v269, %v413
    %v478 = vadd.f32 %v270, %v414
    %v479 = vadd.f32 %v271, %v415
    %v480 = vadd.f32 %v272, %v416
    %v481 = vadd.f32 %v273, %v417
    %v482 = vadd.f32 %v274, %v418
    %v483 = vadd.f32 %v275, %v419
    %v484 = vadd.f32 %v276, %v420
    %v485 = vadd.f32 %v277, %v421
    %v486 = vadd.f32 %v278, %v422
    %v487 = vadd.f32 %v279, %v423
    %v488 = vadd.f32 %v280, %v424
    %v489 = vadd.f32 %v281, %v425
    %v490 = vadd.f32 %v282, %v426
    %v491 = vadd.f32 %v283, %v427
    %v492 = vadd.f32 %v284, %v428
    %v493 = vadd.f32 %v285, %v429
    %v494 = vadd.f32 %v286, %v430
    %v495 = vadd.f32 %v287, %v431
    %v496 = vadd.f32 %v288, %v432
    %v497 = vadd.f32 %v289, %v433
    %v498 = vadd.f32 %v290, %v434
    %v499 = vadd.f32 %v291, %v435
    %v500 = vadd.f32 %v292, %v436
    %v501 = vadd.f32 %v293, %v437
    %v502 = vadd.f32 %v294, %v438
    %v503 = vadd.f32 %v295, %v439
    %v504 = vadd.f32 %v296, %v440
    %v505 = vadd.f32 %v297, %v441
    %v506 = vadd.f32 %v298, %v442
    %v507 = vadd.f32 %v299, %v443
    %v508 = vadd.f32 %v300, %v444
    %v509 = vadd.f32 %v301, %v445
    %v510 = vadd.f32 %v302, %v446
    %v511 = vadd.f32 %v303, %v447
    %v512 = vadd.f32 %v304, %v448
    %v513 = vadd.f32 %v305, %v449
    %v514 = vadd.f32 %v306, %v450
    %v515 = vadd.f32 %v307, %v451
    %v516 = vadd.f32 %v308, %v452
    %v517 = vadd.f32 %v309, %v453
    %v518 = vadd.f32 %v310, %v454
    %v519 = vadd.f32 %v311, %v455
    %v520 = vadd.f32 %v312, %v456
    %v521 = vadd.f32 %v313, %v457
    %v522 = vadd.f32 %v314, %v458
    %v523 = vadd.f32 %v315, %v459
    %v524 = vadd.f32 %v316, %v460
    %vm525 = vcmp.ge.f32.partialorder %v161, 0.0
    %vm526 = vcmp.ge.f32.partialorder %v162, 0.0
    %vm527 = vmand %vm171, %vm525
    %vm528 = vmand %vm172, %vm526
    %vm529 = vcmp.le.f32.partialorder %v161, 15.0
    %vm530 = vcmp.le.f32.partialorder %v162, 15.0
    %vm531 = vmand %vm527, %vm529
    %vm532 = vmand %vm528, %vm530
    %v533 = vsel %vm531, %v163, 0.0
    %v534 = vsel %vm532, %v164, 0.0
    %v535 = vmul.f32 %v161, 16.0
    %v536 = vmul.f32 %v162, 16.0
    %v537 = vadd.f32 %v535, %v143
    %v538 = vadd.f32 %v536, %v144
    %v539 = vcvt.f32.s32.to.zero.pseudo %v537
    %v540 = vcvt.f32.s32.to.zero.pseudo %v538
    %vm541 = vcmp.eq.s32.totalorder %v40, %v539
    %vm542 = vcmp.eq.s32.totalorder %v40, %v540
    %vm543 = vcmp.eq.s32.totalorder %v41, %v539
    %vm544 = vcmp.eq.s32.totalorder %v41, %v540
    %vm545 = vcmp.eq.s32.totalorder %v42, %v539
    %vm546 = vcmp.eq.s32.totalorder %v42, %v540
    %vm547 = vcmp.eq.s32.totalorder %v43, %v539
    %vm548 = vcmp.eq.s32.totalorder %v43, %v540
    %vm549 = vcmp.eq.s32.totalorder %v44, %v539
    %vm550 = vcmp.eq.s32.totalorder %v44, %v540
    %vm551 = vcmp.eq.s32.totalorder %v45, %v539
    %vm552 = vcmp.eq.s32.totalorder %v45, %v540
    %vm553 = vcmp.eq.s32.totalorder %v46, %v539
    %vm554 = vcmp.eq.s32.totalorder %v46, %v540
    %vm555 = vcmp.eq.s32.totalorder %v47, %v539
    %vm556 = vcmp.eq.s32.totalorder %v47, %v540
    %vm557 = vcmp.eq.s32.totalorder %v48, %v539
    %vm558 = vcmp.eq.s32.totalorder %v48, %v540
    %vm559 = vcmp.eq.s32.totalorder %v49, %v539
    %vm560 = vcmp.eq.s32.totalorder %v49, %v540
    %vm561 = vcmp.eq.s32.totalorder %v50, %v539
    %vm562 = vcmp.eq.s32.totalorder %v50, %v540
    %vm563 = vcmp.eq.s32.totalorder %v51, %v539
    %vm564 = vcmp.eq.s32.totalorder %v51, %v540
    %vm565 = vcmp.eq.s32.totalorder %v52, %v539
    %vm566 = vcmp.eq.s32.totalorder %v52, %v540
    %vm567 = vcmp.eq.s32.totalorder %v53, %v539
    %vm568 = vcmp.eq.s32.totalorder %v53, %v540
    %vm569 = vcmp.eq.s32.totalorder %v54, %v539
    %vm570 = vcmp.eq.s32.totalorder %v54, %v540
    %vm571 = vcmp.eq.s32.totalorder %v55, %v539
    %vm572 = vcmp.eq.s32.totalorder %v55, %v540
    %vm573 = vcmp.eq.s32.totalorder %v56, %v539
    %vm574 = vcmp.eq.s32.totalorder %v56, %v540
    %vm575 = vcmp.eq.s32.totalorder %v57, %v539
    %vm576 = vcmp.eq.s32.totalorder %v57, %v540
    %vm577 = vcmp.eq.s32.totalorder %v58, %v539
    %vm578 = vcmp.eq.s32.totalorder %v58, %v540
    %vm579 = vcmp.eq.s32.totalorder %v59, %v539
    %vm580 = vcmp.eq.s32.totalorder %v59, %v540
    %vm581 = vcmp.eq.s32.totalorder %v60, %v539
    %vm582 = vcmp.eq.s32.totalorder %v60, %v540
    %vm583 = vcmp.eq.s32.totalorder %v61, %v539
    %vm584 = vcmp.eq.s32.totalorder %v61, %v540
    %vm585 = vcmp.eq.s32.totalorder %v62, %v539
    %vm586 = vcmp.eq.s32.totalorder %v62, %v540
    %vm587 = vcmp.eq.s32.totalorder %v63, %v539
    %vm588 = vcmp.eq.s32.totalorder %v63, %v540
    %vm589 = vcmp.eq.s32.totalorder %v64, %v539
    %vm590 = vcmp.eq.s32.totalorder %v64, %v540
    %vm591 = vcmp.eq.s32.totalorder %v65, %v539
    %vm592 = vcmp.eq.s32.totalorder %v65, %v540
    %vm593 = vcmp.eq.s32.totalorder %v66, %v539
    %vm594 = vcmp.eq.s32.totalorder %v66, %v540
    %vm595 = vcmp.eq.s32.totalorder %v67, %v539
    %vm596 = vcmp.eq.s32.totalorder %v67, %v540
    %vm597 = vcmp.eq.s32.totalorder %v68, %v539
    %vm598 = vcmp.eq.s32.totalorder %v68, %v540
    %vm599 = vcmp.eq.s32.totalorder %v69, %v539
    %vm600 = vcmp.eq.s32.totalorder %v69, %v540
    %vm601 = vcmp.eq.s32.totalorder %v70, %v539
    %vm602 = vcmp.eq.s32.totalorder %v70, %v540
    %vm603 = vcmp.eq.s32.totalorder %v71, %v539
    %vm604 = vcmp.eq.s32.totalorder %v71, %v540
    %v605 = vsel %vm541, %v533, 0.0
    %v606 = vsel %vm542, %v534, 0.0
    %v607 = vsel %vm543, %v533, 0.0
    %v608 = vsel %vm544, %v534, 0.0
    %v609 = vsel %vm545, %v533, 0.0
    %v610 = vsel %vm546, %v534, 0.0
    %v611 = vsel %vm547, %v533, 0.0
    %v612 = vsel %vm548, %v534, 0.0
    %v613 = vsel %vm549, %v533, 0.0
    %v614 = vsel %vm550, %v534, 0.0
    %v615 = vsel %vm551, %v533, 0.0
    %v616 = vsel %vm552, %v534, 0.0
    %v617 = vsel %vm553, %v533, 0.0
    %v618 = vsel %vm554, %v534, 0.0
    %v619 = vsel %vm555, %v533, 0.0
    %v620 = vsel %vm556, %v534, 0.0
    %v621 = vsel %vm557, %v533, 0.0
    %v622 = vsel %vm558, %v534, 0.0
    %v623 = vsel %vm559, %v533, 0.0
    %v624 = vsel %vm560, %v534, 0.0
    %v625 = vsel %vm561, %v533, 0.0
    %v626 = vsel %vm562, %v534, 0.0
    %v627 = vsel %vm563, %v533, 0.0
    %v628 = vsel %vm564, %v534, 0.0
    %v629 = vsel %vm565, %v533, 0.0
    %v630 = vsel %vm566, %v534, 0.0
    %v631 = vsel %vm567, %v533, 0.0
    %v632 = vsel %vm568, %v534, 0.0
    %v633 = vsel %vm569, %v533, 0.0
    %v634 = vsel %vm570, %v534, 0.0
    %v635 = vsel %vm571, %v533, 0.0
    %v636 = vsel %vm572, %v534, 0.0
    %v637 = vsel %vm573, %v533, 0.0
    %v638 = vsel %vm574, %v534, 0.0
    %v639 = vsel %vm575, %v533, 0.0
    %v640 = vsel %vm576, %v534, 0.0
    %v641 = vsel %vm577, %v533, 0.0
    %v642 = vsel %vm578, %v534, 0.0
    %v643 = vsel %vm579, %v533, 0.0
    %v644 = vsel %vm580, %v534, 0.0
    %v645 = vsel %vm581, %v533, 0.0
    %v646 = vsel %vm582, %v534, 0.0
    %v647 = vsel %vm583, %v533, 0.0
    %v648 = vsel %vm584, %v534, 0.0
    %v649 = vsel %vm585, %v533, 0.0
    %v650 = vsel %vm586, %v534, 0.0
    %v651 = vsel %vm587, %v533, 0.0
    %v652 = vsel %vm588, %v534, 0.0
    %v653 = vsel %vm589, %v533, 0.0
    %v654 = vsel %vm590, %v534, 0.0
    %v655 = vsel %vm591, %v533, 0.0
    %v656 = vsel %vm592, %v534, 0.0
    %v657 = vsel %vm593, %v533, 0.0
    %v658 = vsel %vm594, %v534, 0.0
    %v659 = vsel %vm595, %v533, 0.0
    %v660 = vsel %vm596, %v534, 0.0
    %v661 = vsel %vm597, %v533, 0.0
    %v662 = vsel %vm598, %v534, 0.0
    %v663 = vsel %vm599, %v533, 0.0
    %v664 = vsel %vm600, %v534, 0.0
    %v665 = vsel %vm601, %v533, 0.0
    %v666 = vsel %vm602, %v534, 0.0
    %v667 = vsel %vm603, %v533, 0.0
    %v668 = vsel %vm604, %v534, 0.0
    %v669 = vadd.f32 %v461, %v605
    %v670 = vadd.f32 %v462, %v606
    %v671 = vadd.f32 %v463, %v607
    %v672 = vadd.f32 %v464, %v608
    %v673 = vadd.f32 %v465, %v609
    %v674 = vadd.f32 %v466, %v610
    %v675 = vadd.f32 %v467, %v611
    %v676 = vadd.f32 %v468, %v612
    %v677 = vadd.f32 %v469, %v613
    %v678 = vadd.f32 %v470, %v614
    %v679 = vadd.f32 %v471, %v615
    %v680 = vadd.f32 %v472, %v616
    %v681 = vadd.f32 %v473, %v617
    %v682 = vadd.f32 %v474, %v618
    %v683 = vadd.f32 %v475, %v619
    %v684 = vadd.f32 %v476, %v620
    %v685 = vadd.f32 %v477, %v621
    %v686 = vadd.f32 %v478, %v622
    %v687 = vadd.f32 %v479, %v623
    %v688 = vadd.f32 %v480, %v624
    %v689 = vadd.f32 %v481, %v625
    %v690 = vadd.f32 %v482, %v626
    %v691 = vadd.f32 %v483, %v627
    %v692 = vadd.f32 %v484, %v628
    %v693 = vadd.f32 %v485, %v629
    %v694 = vadd.f32 %v486, %v630
    %v695 = vadd.f32 %v487, %v631
    %v696 = vadd.f32 %v488, %v632
    %v697 = vadd.f32 %v489, %v633
    %v698 = vadd.f32 %v490, %v634
    %v699 = vadd.f32 %v491, %v635
    %v700 = vadd.f32 %v492, %v636
    %v701 = vadd.f32 %v493, %v637
    %v702 = vadd.f32 %v494, %v638
    %v703 = vadd.f32 %v495, %v639
    %v704 = vadd.f32 %v496, %v640
    %v705 = vadd.f32 %v497, %v641
    %v706 = vadd.f32 %v498, %v642
    %v707 = vadd.f32 %v499, %v643
    %v708 = vadd.f32 %v500, %v644
    %v709 = vadd.f32 %v501, %v645
    %v710 = vadd.f32 %v502, %v646
    %v711 = vadd.f32 %v503, %v647
    %v712 = vadd.f32 %v504, %v648
    %v713 = vadd.f32 %v505, %v649
    %v714 = vadd.f32 %v506, %v650
    %v715 = vadd.f32 %v507, %v651
    %v716 = vadd.f32 %v508, %v652
    %v717 = vadd.f32 %v509, %v653
    %v718 = vadd.f32 %v510, %v654
    %v719 = vadd.f32 %v511, %v655
    %v720 = vadd.f32 %v512, %v656
    %v721 = vadd.f32 %v513, %v657
    %v722 = vadd.f32 %v514, %v658
    %v723 = vadd.f32 %v515, %v659
    %v724 = vadd.f32 %v516, %v660
    %v725 = vadd.f32 %v517, %v661
    %v726 = vadd.f32 %v518, %v662
    %v727 = vadd.f32 %v519, %v663
    %v728 = vadd.f32 %v520, %v664
    %v729 = vadd.f32 %v521, %v665
    %v730 = vadd.f32 %v522, %v666
    %v731 = vadd.f32 %v523, %v667
    %v732 = vadd.f32 %v524, %v668
    %vm733 = vmand %vm321, %vm525
    %vm734 = vmand %vm322, %vm526
    %vm735 = vmand %vm733, %vm529
    %vm736 = vmand %vm734, %vm530
    %v737 = vsel %vm735, %v165, 0.0
    %v738 = vsel %vm736, %v166, 0.0
    %v739 = vadd.f32 %v535, %v157
    %v740 = vadd.f32 %v536, %v158
    %v741 = vcvt.f32.s32.to.zero.pseudo %v739
    %v742 = vcvt.f32.s32.to.zero.pseudo %v740
    %vm743 = vcmp.eq.s32.totalorder %v40, %v741
    %vm744 = vcmp.eq.s32.totalorder %v40, %v742
    %vm745 = vcmp.eq.s32.totalorder %v41, %v741
    %vm746 = vcmp.eq.s32.totalorder %v41, %v742
    %vm747 = vcmp.eq.s32.totalorder %v42, %v741
    %vm748 = vcmp.eq.s32.totalorder %v42, %v742
    %vm749 = vcmp.eq.s32.totalorder %v43, %v741
    %vm750 = vcmp.eq.s32.totalorder %v43, %v742
    %vm751 = vcmp.eq.s32.totalorder %v44, %v741
    %vm752 = vcmp.eq.s32.totalorder %v44, %v742
    %vm753 = vcmp.eq.s32.totalorder %v45, %v741
    %vm754 = vcmp.eq.s32.totalorder %v45, %v742
    %vm755 = vcmp.eq.s32.totalorder %v46, %v741
    %vm756 = vcmp.eq.s32.totalorder %v46, %v742
    %vm757 = vcmp.eq.s32.totalorder %v47, %v741
    %vm758 = vcmp.eq.s32.totalorder %v47, %v742
    %vm759 = vcmp.eq.s32.totalorder %v48, %v741
    %vm760 = vcmp.eq.s32.totalorder %v48, %v742
    %vm761 = vcmp.eq.s32.totalorder %v49, %v741
    %vm762 = vcmp.eq.s32.totalorder %v49, %v742
    %vm763 = vcmp.eq.s32.totalorder %v50, %v741
    %vm764 = vcmp.eq.s32.totalorder %v50, %v742
    %vm765 = vcmp.eq.s32.totalorder %v51, %v741
    %vm766 = vcmp.eq.s32.totalorder %v51, %v742
    %vm767 = vcmp.eq.s32.totalorder %v52, %v741
    %vm768 = vcmp.eq.s32.totalorder %v52, %v742
    %vm769 = vcmp.eq.s32.totalorder %v53, %v741
    %vm770 = vcmp.eq.s32.totalorder %v53, %v742
    %vm771 = vcmp.eq.s32.totalorder %v54, %v741
    %vm772 = vcmp.eq.s32.totalorder %v54, %v742
    %vm773 = vcmp.eq.s32.totalorder %v55, %v741
    %vm774 = vcmp.eq.s32.totalorder %v55, %v742
    %vm775 = vcmp.eq.s32.totalorder %v56, %v741
    %vm776 = vcmp.eq.s32.totalorder %v56, %v742
    %vm777 = vcmp.eq.s32.totalorder %v57, %v741
    %vm778 = vcmp.eq.s32.totalorder %v57, %v742
    %vm779 = vcmp.eq.s32.totalorder %v58, %v741
    %vm780 = vcmp.eq.s32.totalorder %v58, %v742
    %vm781 = vcmp.eq.s32.totalorder %v59, %v741
    %vm782 = vcmp.eq.s32.totalorder %v59, %v742
    %vm783 = vcmp.eq.s32.totalorder %v60, %v741
    %vm784 = vcmp.eq.s32.totalorder %v60, %v742
    %vm785 = vcmp.eq.s32.totalorder %v61, %v741
    %vm786 = vcmp.eq.s32.totalorder %v61, %v742
    %vm787 = vcmp.eq.s32.totalorder %v62, %v741
    %vm788 = vcmp.eq.s32.totalorder %v62, %v742
    %vm789 = vcmp.eq.s32.totalorder %v63, %v741
    %vm790 = vcmp.eq.s32.totalorder %v63, %v742
    %vm791 = vcmp.eq.s32.totalorder %v64, %v741
    %vm792 = vcmp.eq.s32.totalorder %v64, %v742
    %vm793 = vcmp.eq.s32.totalorder %v65, %v741
    %vm794 = vcmp.eq.s32.totalorder %v65, %v742
    %vm795 = vcmp.eq.s32.totalorder %v66, %v741
    %vm796 = vcmp.eq.s32.totalorder %v66, %v742
    %vm797 = vcmp.eq.s32.totalorder %v67, %v741
    %vm798 = vcmp.eq.s32.totalorder %v67, %v742
    %vm799 = vcmp.eq.s32.totalorder %v68, %v741
    %vm800 = vcmp.eq.s32.totalorder %v68, %v742
    %vm801 = vcmp.eq.s32.totalorder %v69, %v741
    %vm802 = vcmp.eq.s32.totalorder %v69, %v742
    %vm803 = vcmp.eq.s32.totalorder %v70, %v741
    %vm804 = vcmp.eq.s32.totalorder %v70, %v742
    %vm805 = vcmp.eq.s32.totalorder %v71, %v741
    %vm806 = vcmp.eq.s32.totalorder %v71, %v742
    %v807 = vsel %vm743, %v737, 0.0
    %v808 = vsel %vm744, %v738, 0.0
    %v809 = vsel %vm745, %v737, 0.0
    %v810 = vsel %vm746, %v738, 0.0
    %v811 = vsel %vm747, %v737, 0.0
    %v812 = vsel %vm748, %v738, 0.0
    %v813 = vsel %vm749, %v737, 0.0
    %v814 = vsel %vm750, %v738, 0.0
    %v815 = vsel %vm751, %v737, 0.0
    %v816 = vsel %vm752, %v738, 0.0
    %v817 = vsel %vm753, %v737, 0.0
    %v818 = vsel %vm754, %v738, 0.0
    %v819 = vsel %vm755, %v737, 0.0
    %v820 = vsel %vm756, %v738, 0.0
    %v821 = vsel %vm757, %v737, 0.0
    %v822 = vsel %vm758, %v738, 0.0
    %v823 = vsel %vm759, %v737, 0.0
    %v824 = vsel %vm760, %v738, 0.0
    %v825 = vsel %vm761, %v737, 0.0
    %v826 = vsel %vm762, %v738, 0.0
    %v827 = vsel %vm763, %v737, 0.0
    %v828 = vsel %vm764, %v738, 0.0
    %v829 = vsel %vm765, %v737, 0.0
    %v830 = vsel %vm766, %v738, 0.0
    %v831 = vsel %vm767, %v737, 0.0
    %v832 = vsel %vm768, %v738, 0.0
    %v833 = vsel %vm769, %v737, 0.0
    %v834 = vsel %vm770, %v738, 0.0
    %v835 = vsel %vm771, %v737, 0.0
    %v836 = vsel %vm772, %v738, 0.0
    %v837 = vsel %vm773, %v737, 0.0
    %v838 = vsel %vm774, %v738, 0.0
    %v839 = vsel %vm775, %v737, 0.0
    %v840 = vsel %vm776, %v738, 0.0
    %v841 = vsel %vm777, %v737, 0.0
    %v842 = vsel %vm778, %v738, 0.0
    %v843 = vsel %vm779, %v737, 0.0
    %v844 = vsel %vm780, %v738, 0.0
    %v845 = vsel %vm781, %v737, 0.0
    %v846 = vsel %vm782, %v738, 0.0
    %v847 = vsel %vm783, %v737, 0.0
    %v848 = vsel %vm784, %v738, 0.0
    %v849 = vsel %vm785, %v737, 0.0
    %v850 = vsel %vm786, %v738, 0.0
    %v851 = vsel %vm787, %v737, 0.0
    %v852 = vsel %vm788, %v738, 0.0
    %v853 = vsel %vm789, %v737, 0.0
    %v854 = vsel %vm790, %v738, 0.0
    %v855 = vsel %vm791, %v737, 0.0
    %v856 = vsel %vm792, %v738, 0.0
    %v857 = vsel %vm793, %v737, 0.0
    %v858 = vsel %vm794, %v738, 0.0
    %v859 = vsel %vm795, %v737, 0.0
    %v860 = vsel %vm796, %v738, 0.0
    %v861 = vsel %vm797, %v737, 0.0
    %v862 = vsel %vm798, %v738, 0.0
    %v863 = vsel %vm799, %v737, 0.0
    %v864 = vsel %vm800, %v738, 0.0
    %v865 = vsel %vm801, %v737, 0.0
    %v866 = vsel %vm802, %v738, 0.0
    %v867 = vsel %vm803, %v737, 0.0
    %v868 = vsel %vm804, %v738, 0.0
    %v869 = vsel %vm805, %v737, 0.0
    %v870 = vsel %vm806, %v738, 0.0
    %v871 = vadd.f32 %v669, %v807
    %v872 = vadd.f32 %v670, %v808
    %v873 = vadd.f32 %v671, %v809
    %v874 = vadd.f32 %v672, %v810
    %v875 = vadd.f32 %v673, %v811
    %v876 = vadd.f32 %v674, %v812
    %v877 = vadd.f32 %v675, %v813
    %v878 = vadd.f32 %v676, %v814
    %v879 = vadd.f32 %v677, %v815
    %v880 = vadd.f32 %v678, %v816
    %v881 = vadd.f32 %v679, %v817
    %v882 = vadd.f32 %v680, %v818
    %v883 = vadd.f32 %v681, %v819
    %v884 = vadd.f32 %v682, %v820
    %v885 = vadd.f32 %v683, %v821
    %v886 = vadd.f32 %v684, %v822
    %v887 = vadd.f32 %v685, %v823
    %v888 = vadd.f32 %v686, %v824
    %v889 = vadd.f32 %v687, %v825
    %v890 = vadd.f32 %v688, %v826
    %v891 = vadd.f32 %v689, %v827
    %v892 = vadd.f32 %v690, %v828
    %v893 = vadd.f32 %v691, %v829
    %v894 = vadd.f32 %v692, %v830
    %v895 = vadd.f32 %v693, %v831
    %v896 = vadd.f32 %v694, %v832
    %v897 = vadd.f32 %v695, %v833
    %v898 = vadd.f32 %v696, %v834
    %v899 = vadd.f32 %v697, %v835
    %v900 = vadd.f32 %v698, %v836
    %v901 = vadd.f32 %v699, %v837
    %v902 = vadd.f32 %v700, %v838
    %v903 = vadd.f32 %v701, %v839
    %v904 = vadd.f32 %v702, %v840
    %v905 = vadd.f32 %v703, %v841
    %v906 = vadd.f32 %v704, %v842
    %v907 = vadd.f32 %v705, %v843
    %v908 = vadd.f32 %v706, %v844
    %v909 = vadd.f32 %v707, %v845
    %v910 = vadd.f32 %v708, %v846
    %v911 = vadd.f32 %v709, %v847
    %v912 = vadd.f32 %v710, %v848
    %v913 = vadd.f32 %v711, %v849
    %v914 = vadd.f32 %v712, %v850
    %v915 = vadd.f32 %v713, %v851
    %v916 = vadd.f32 %v714, %v852
    %v917 = vadd.f32 %v715, %v853
    %v918 = vadd.f32 %v716, %v854
    %v919 = vadd.f32 %v717, %v855
    %v920 = vadd.f32 %v718, %v856
    %v921 = vadd.f32 %v719, %v857
    %v922 = vadd.f32 %v720, %v858
    %v923 = vadd.f32 %v721, %v859
    %v924 = vadd.f32 %v722, %v860
    %v925 = vadd.f32 %v723, %v861
    %v926 = vadd.f32 %v724, %v862
    %v927 = vadd.f32 %v725, %v863
    %v928 = vadd.f32 %v726, %v864
    %v929 = vadd.f32 %v727, %v865
    %v930 = vadd.f32 %v728, %v866
    %v931 = vadd.f32 %v729, %v867
    %v932 = vadd.f32 %v730, %v868
    %v933 = vadd.f32 %v731, %v869
    %v934 = vadd.f32 %v732, %v870
    %935 = vmatprep.subr.mxu0 %v872
    %936 = vmatpush1.msra.mxu0 %v871
    %937 = vmatprep.subr.mxu0 %v874
    %938 = vmatpush1.msra.mxu0 %v873
    %939 = vmatprep.subr.mxu0 %v876
    %940 = vmatpush1.msra.mxu0 %v875
    %941 = vmatprep.subr.mxu0 %v878
    %942 = vmatpush1.msra.mxu0 %v877
    %943 = vmatprep.subr.mxu0 %v880
    %944 = vmatpush1.msra.mxu0 %v879
    %945 = vmatprep.subr.mxu0 %v882
    %946 = vmatpush1.msra.mxu0 %v881
    %947 = vmatprep.subr.mxu0 %v884
    %948 = vmatpush1.msra.mxu0 %v883
    %949 = vmatprep.subr.mxu0 %v886
    %950 = vmatpush1.msra.mxu0 %v885
    %951 = vmatprep.subr.mxu0 %v888
    %952 = vmatpush1.msra.mxu0 %v887
    %953 = vmatprep.subr.mxu0 %v890
    %954 = vmatpush1.msra.mxu0 %v889
    %955 = vmatprep.subr.mxu0 %v892
    %956 = vmatpush1.msra.mxu0 %v891
    %957 = vmatprep.subr.mxu0 %v894
    %958 = vmatpush1.msra.mxu0 %v893
    %959 = vmatprep.subr.mxu0 %v896
    %960 = vmatpush1.msra.mxu0 %v895
    %961 = vmatprep.subr.mxu0 %v898
    %962 = vmatpush1.msra.mxu0 %v897
    %963 = vmatprep.subr.mxu0 %v900
    %964 = vmatpush1.msra.mxu0 %v899
    %965 = vmatprep.subr.mxu0 %v902
    %966 = vmatpush1.msra.mxu0 %v901
    %967 = vmatprep.subr.mxu0 %v904
    %968 = vmatpush1.msra.mxu0 %v903
    %969 = vmatprep.subr.mxu0 %v906
    %970 = vmatpush1.msra.mxu0 %v905
    %971 = vmatprep.subr.mxu0 %v908
    %972 = vmatpush1.msra.mxu0 %v907
    %973 = vmatprep.subr.mxu0 %v910
    %974 = vmatpush1.msra.mxu0 %v909
    %975 = vmatprep.subr.mxu0 %v912
    %976 = vmatpush1.msra.mxu0 %v911
    %977 = vmatprep.subr.mxu0 %v914
    %978 = vmatpush1.msra.mxu0 %v913
    %979 = vmatprep.subr.mxu0 %v916
    %980 = vmatpush1.msra.mxu0 %v915
    %981 = vmatprep.subr.mxu0 %v918
    %982 = vmatpush1.msra.mxu0 %v917
    %983 = vmatprep.subr.mxu0 %v920
    %984 = vmatpush1.msra.mxu0 %v919
    %985 = vmatprep.subr.mxu0 %v922
    %986 = vmatpush1.msra.mxu0 %v921
    %987 = vmatprep.subr.mxu0 %v924
    %988 = vmatpush1.msra.mxu0 %v923
    %989 = vmatprep.subr.mxu0 %v926
    %990 = vmatpush1.msra.mxu0 %v925
    %991 = vmatprep.subr.mxu0 %v928
    %992 = vmatpush1.msra.mxu0 %v927
    %993 = vmatprep.subr.mxu0 %v930
    %994 = vmatpush1.msra.mxu0 %v929
    %995 = vmatprep.subr.mxu0 %v932
    %996 = vmatpush1.msra.mxu0 %v931
    %997 = vmatprep.subr.mxu0 %v934
    %998 = vmatpush1.msra.mxu0 %v933
    %999 = vmatprep.mubr.f32.mxu0 %v90
    %1000 = vmatmul.mubr.f32.gmra.mrb[0].mxu0 %v89
    %v1001 = vpop.f32.mrb[0].mxu0
    %v1002 = vadd.f32 0.0, %v1001
    %v1003 = vpop.f32.mrb[0].mxu0
    %v1004 = vadd.f32 0.0, %v1003
    %1005 = vmatprep.mubr.f32.mxu0 %v92
    %1006 = vmatmul.mubr.f32.gmra.mrb[0].mxu0 %v91
    %v1007 = vpop.f32.mrb[0].mxu0
    %v1008 = vadd.f32 0.0, %v1007
    %v1009 = vpop.f32.mrb[0].mxu0
    %v1010 = vadd.f32 0.0, %v1009
    %1011 = vmatprep.mubr.f32.mxu0 %v94
    %1012 = vmatmul.mubr.f32.gmra.mrb[0].mxu0 %v93
    %v1013 = vpop.f32.mrb[0].mxu0
    %v1014 = vadd.f32 0.0, %v1013
    %v1015 = vpop.f32.mrb[0].mxu0
    %v1016 = vadd.f32 0.0, %v1015
    %1017 = vmatprep.mubr.f32.mxu0 %v96
    %1018 = vmatmul.mubr.f32.gmra.mrb[0].mxu0 %v95
    %v1019 = vpop.f32.mrb[0].mxu0
    %v1020 = vadd.f32 0.0, %v1019
    %v1021 = vpop.f32.mrb[0].mxu0
    %v1022 = vadd.f32 0.0, %v1021
    %1023 = vmatprep.mubr.f32.mxu0 %v98
    %1024 = vmatmul.mubr.f32.gmra.mrb[0].mxu0 %v97
    %v1025 = vpop.f32.mrb[0].mxu0
    %v1026 = vadd.f32 0.0, %v1025
    %v1027 = vpop.f32.mrb[0].mxu0
    %v1028 = vadd.f32 0.0, %v1027
    %1029 = vdwg.mxu0
    %s1030 = sld [smem:[#allocation2 + $0x80]]
    %s1031 = sld [smem:[#allocation2 + $0x81]]
    %s1032 = sld [smem:[#allocation2 + $0x82]]
    %s1033 = sld [smem:[#allocation2 + $0x83]]
    %s1034 = sld [smem:[#allocation2 + $0x84]]
    %s1035 = sld [smem:[#allocation2 + $0x85]]
    %v1036 = vstv %s1030
    %v1037 = vmul.f32 %v1036, %v79
    %v1038 = vmul.f32 %v1036, %v80
    %v1039 = vstv %s1031
    %v1040 = vmul.f32 %v1039, %v87
    %v1041 = vmul.f32 %v1039, %v88
    %v1042 = vadd.f32 %v1037, %v1040
    %v1043 = vadd.f32 %v1038, %v1041
    %v1044 = vstv %s1032
    %v1045 = vadd.f32 %v1042, %v1044
    %v1046 = vadd.f32 %v1043, %v1044
    %v1047 = vstv %s1033
    %v1048 = vmul.f32 %v1047, %v79
    %v1049 = vmul.f32 %v1047, %v80
    %v1050 = vstv %s1034
    %v1051 = vmul.f32 %v1050, %v87
    %v1052 = vmul.f32 %v1050, %v88
    %v1053 = vadd.f32 %v1048, %v1051
    %v1054 = vadd.f32 %v1049, %v1052
    %v1055 = vstv %s1035
    %v1056 = vadd.f32 %v1053, %v1055
    %v1057 = vadd.f32 %v1054, %v1055
    %v1058 = vadd.f32 %v1045, 1.0
    %v1059 = vadd.f32 %v1046, 1.0
    %v1060 = vmul.f32 %v1058, 16.0
    %v1061 = vmul.f32 %v1059, 16.0
    %v1062 = vsub.f32 %v1060, 1.0
    %v1063 = vsub.f32 %v1061, 1.0
    %v1064 = vmul.f32 %v1062, 0.5
    %v1065 = vmul.f32 %v1063, 0.5
    %v1066 = vadd.f32 %v1056, 1.0
    %v1067 = vadd.f32 %v1057, 1.0
    %v1068 = vmul.f32 %v1066, 16.0
    %v1069 = vmul.f32 %v1067, 16.0
    %v1070 = vsub.f32 %v1068, 1.0
    %v1071 = vsub.f32 %v1069, 1.0
    %v1072 = vmul.f32 %v1070, 0.5
    %v1073 = vmul.f32 %v1071, 0.5
    %v1074 = vfloor.f32 %v1064
    %v1075 = vfloor.f32 %v1065
    %v1076 = vfloor.f32 %v1072
    %v1077 = vfloor.f32 %v1073
    %v1078 = vsub.f32 %v1064, %v1074
    %v1079 = vsub.f32 %v1065, %v1075
    %v1080 = vsub.f32 %v1072, %v1076
    %v1081 = vsub.f32 %v1073, %v1077
    %v1082 = vsub.f32 1.0, %v1078
    %v1083 = vsub.f32 1.0, %v1079
    %v1084 = vsub.f32 1.0, %v1080
    %v1085 = vsub.f32 1.0, %v1081
    %v1086 = vmul.f32 %v1082, %v1084
    %v1087 = vmul.f32 %v1083, %v1085
    %v1088 = vadd.f32 %v1074, 1.0
    %v1089 = vadd.f32 %v1075, 1.0
    %v1090 = vmul.f32 %v1078, %v1084
    %v1091 = vmul.f32 %v1079, %v1085
    %v1092 = vadd.f32 %v1076, 1.0
    %v1093 = vadd.f32 %v1077, 1.0
    %v1094 = vmul.f32 %v1082, %v1080
    %v1095 = vmul.f32 %v1083, %v1081
    %v1096 = vmul.f32 %v1078, %v1080
    %v1097 = vmul.f32 %v1079, %v1081
    %vm1098 = vcmp.ge.f32.partialorder %v1074, 0.0
    %vm1099 = vcmp.ge.f32.partialorder %v1075, 0.0
    %vm1100 = vcmp.le.f32.partialorder %v1074, 15.0
    %vm1101 = vcmp.le.f32.partialorder %v1075, 15.0
    %vm1102 = vmand %vm1098, %vm1100
    %vm1103 = vmand %vm1099, %vm1101
    %vm1104 = vcmp.ge.f32.partialorder %v1076, 0.0
    %vm1105 = vcmp.ge.f32.partialorder %v1077, 0.0
    %vm1106 = vmand %vm1102, %vm1104
    %vm1107 = vmand %vm1103, %vm1105
    %vm1108 = vcmp.le.f32.partialorder %v1076, 15.0
    %vm1109 = vcmp.le.f32.partialorder %v1077, 15.0
    %vm1110 = vmand %vm1106, %vm1108
    %vm1111 = vmand %vm1107, %vm1109
    %v1112 = vsel %vm1110, %v1086, 0.0
    %v1113 = vsel %vm1111, %v1087, 0.0
    %v1114 = vmul.f32 %v1076, 16.0
    %v1115 = vmul.f32 %v1077, 16.0
    %v1116 = vadd.f32 %v1114, %v1074
    %v1117 = vadd.f32 %v1115, %v1075
    %v1118 = vcvt.f32.s32.to.zero.pseudo %v1116
    %v1119 = vcvt.f32.s32.to.zero.pseudo %v1117
    %vm1120 = vcmp.eq.s32.totalorder %v40, %v1118
    %vm1121 = vcmp.eq.s32.totalorder %v40, %v1119
    %vm1122 = vcmp.eq.s32.totalorder %v41, %v1118
    %vm1123 = vcmp.eq.s32.totalorder %v41, %v1119
    %vm1124 = vcmp.eq.s32.totalorder %v42, %v1118
    %vm1125 = vcmp.eq.s32.totalorder %v42, %v1119
    %vm1126 = vcmp.eq.s32.totalorder %v43, %v1118
    %vm1127 = vcmp.eq.s32.totalorder %v43, %v1119
    %vm1128 = vcmp.eq.s32.totalorder %v44, %v1118
    %vm1129 = vcmp.eq.s32.totalorder %v44, %v1119
    %vm1130 = vcmp.eq.s32.totalorder %v45, %v1118
    %vm1131 = vcmp.eq.s32.totalorder %v45, %v1119
    %vm1132 = vcmp.eq.s32.totalorder %v46, %v1118
    %vm1133 = vcmp.eq.s32.totalorder %v46, %v1119
    %vm1134 = vcmp.eq.s32.totalorder %v47, %v1118
    %vm1135 = vcmp.eq.s32.totalorder %v47, %v1119
    %vm1136 = vcmp.eq.s32.totalorder %v48, %v1118
    %vm1137 = vcmp.eq.s32.totalorder %v48, %v1119
    %vm1138 = vcmp.eq.s32.totalorder %v49, %v1118
    %vm1139 = vcmp.eq.s32.totalorder %v49, %v1119
    %vm1140 = vcmp.eq.s32.totalorder %v50, %v1118
    %vm1141 = vcmp.eq.s32.totalorder %v50, %v1119
    %vm1142 = vcmp.eq.s32.totalorder %v51, %v1118
    %vm1143 = vcmp.eq.s32.totalorder %v51, %v1119
    %vm1144 = vcmp.eq.s32.totalorder %v52, %v1118
    %vm1145 = vcmp.eq.s32.totalorder %v52, %v1119
    %vm1146 = vcmp.eq.s32.totalorder %v53, %v1118
    %vm1147 = vcmp.eq.s32.totalorder %v53, %v1119
    %vm1148 = vcmp.eq.s32.totalorder %v54, %v1118
    %vm1149 = vcmp.eq.s32.totalorder %v54, %v1119
    %vm1150 = vcmp.eq.s32.totalorder %v55, %v1118
    %vm1151 = vcmp.eq.s32.totalorder %v55, %v1119
    %vm1152 = vcmp.eq.s32.totalorder %v56, %v1118
    %vm1153 = vcmp.eq.s32.totalorder %v56, %v1119
    %vm1154 = vcmp.eq.s32.totalorder %v57, %v1118
    %vm1155 = vcmp.eq.s32.totalorder %v57, %v1119
    %vm1156 = vcmp.eq.s32.totalorder %v58, %v1118
    %vm1157 = vcmp.eq.s32.totalorder %v58, %v1119
    %vm1158 = vcmp.eq.s32.totalorder %v59, %v1118
    %vm1159 = vcmp.eq.s32.totalorder %v59, %v1119
    %vm1160 = vcmp.eq.s32.totalorder %v60, %v1118
    %vm1161 = vcmp.eq.s32.totalorder %v60, %v1119
    %vm1162 = vcmp.eq.s32.totalorder %v61, %v1118
    %vm1163 = vcmp.eq.s32.totalorder %v61, %v1119
    %vm1164 = vcmp.eq.s32.totalorder %v62, %v1118
    %vm1165 = vcmp.eq.s32.totalorder %v62, %v1119
    %vm1166 = vcmp.eq.s32.totalorder %v63, %v1118
    %vm1167 = vcmp.eq.s32.totalorder %v63, %v1119
    %vm1168 = vcmp.eq.s32.totalorder %v64, %v1118
    %vm1169 = vcmp.eq.s32.totalorder %v64, %v1119
    %vm1170 = vcmp.eq.s32.totalorder %v65, %v1118
    %vm1171 = vcmp.eq.s32.totalorder %v65, %v1119
    %vm1172 = vcmp.eq.s32.totalorder %v66, %v1118
    %vm1173 = vcmp.eq.s32.totalorder %v66, %v1119
    %vm1174 = vcmp.eq.s32.totalorder %v67, %v1118
    %vm1175 = vcmp.eq.s32.totalorder %v67, %v1119
    %vm1176 = vcmp.eq.s32.totalorder %v68, %v1118
    %vm1177 = vcmp.eq.s32.totalorder %v68, %v1119
    %vm1178 = vcmp.eq.s32.totalorder %v69, %v1118
    %vm1179 = vcmp.eq.s32.totalorder %v69, %v1119
    %vm1180 = vcmp.eq.s32.totalorder %v70, %v1118
    %vm1181 = vcmp.eq.s32.totalorder %v70, %v1119
    %vm1182 = vcmp.eq.s32.totalorder %v71, %v1118
    %vm1183 = vcmp.eq.s32.totalorder %v71, %v1119
    %v1184 = vsel %vm1120, %v1112, 0.0
    %v1185 = vsel %vm1121, %v1113, 0.0
    %v1186 = vsel %vm1122, %v1112, 0.0
    %v1187 = vsel %vm1123, %v1113, 0.0
    %v1188 = vsel %vm1124, %v1112, 0.0
    %v1189 = vsel %vm1125, %v1113, 0.0
    %v1190 = vsel %vm1126, %v1112, 0.0
    %v1191 = vsel %vm1127, %v1113, 0.0
    %v1192 = vsel %vm1128, %v1112, 0.0
    %v1193 = vsel %vm1129, %v1113, 0.0
    %v1194 = vsel %vm1130, %v1112, 0.0
    %v1195 = vsel %vm1131, %v1113, 0.0
    %v1196 = vsel %vm1132, %v1112, 0.0
    %v1197 = vsel %vm1133, %v1113, 0.0
    %v1198 = vsel %vm1134, %v1112, 0.0
    %v1199 = vsel %vm1135, %v1113, 0.0
    %v1200 = vsel %vm1136, %v1112, 0.0
    %v1201 = vsel %vm1137, %v1113, 0.0
    %v1202 = vsel %vm1138, %v1112, 0.0
    %v1203 = vsel %vm1139, %v1113, 0.0
    %v1204 = vsel %vm1140, %v1112, 0.0
    %v1205 = vsel %vm1141, %v1113, 0.0
    %v1206 = vsel %vm1142, %v1112, 0.0
    %v1207 = vsel %vm1143, %v1113, 0.0
    %v1208 = vsel %vm1144, %v1112, 0.0
    %v1209 = vsel %vm1145, %v1113, 0.0
    %v1210 = vsel %vm1146, %v1112, 0.0
    %v1211 = vsel %vm1147, %v1113, 0.0
    %v1212 = vsel %vm1148, %v1112, 0.0
    %v1213 = vsel %vm1149, %v1113, 0.0
    %v1214 = vsel %vm1150, %v1112, 0.0
    %v1215 = vsel %vm1151, %v1113, 0.0
    %v1216 = vsel %vm1152, %v1112, 0.0
    %v1217 = vsel %vm1153, %v1113, 0.0
    %v1218 = vsel %vm1154, %v1112, 0.0
    %v1219 = vsel %vm1155, %v1113, 0.0
    %v1220 = vsel %vm1156, %v1112, 0.0
    %v1221 = vsel %vm1157, %v1113, 0.0
    %v1222 = vsel %vm1158, %v1112, 0.0
    %v1223 = vsel %vm1159, %v1113, 0.0
    %v1224 = vsel %vm1160, %v1112, 0.0
    %v1225 = vsel %vm1161, %v1113, 0.0
    %v1226 = vsel %vm1162, %v1112, 0.0
    %v1227 = vsel %vm1163, %v1113, 0.0
    %v1228 = vsel %vm1164, %v1112, 0.0
    %v1229 = vsel %vm1165, %v1113, 0.0
    %v1230 = vsel %vm1166, %v1112, 0.0
    %v1231 = vsel %vm1167, %v1113, 0.0
    %v1232 = vsel %vm1168, %v1112, 0.0
    %v1233 = vsel %vm1169, %v1113, 0.0
    %v1234 = vsel %vm1170, %v1112, 0.0
    %v1235 = vsel %vm1171, %v1113, 0.0
    %v1236 = vsel %vm1172, %v1112, 0.0
    %v1237 = vsel %vm1173, %v1113, 0.0
    %v1238 = vsel %vm1174, %v1112, 0.0
    %v1239 = vsel %vm1175, %v1113, 0.0
    %v1240 = vsel %vm1176, %v1112, 0.0
    %v1241 = vsel %vm1177, %v1113, 0.0
    %v1242 = vsel %vm1178, %v1112, 0.0
    %v1243 = vsel %vm1179, %v1113, 0.0
    %v1244 = vsel %vm1180, %v1112, 0.0
    %v1245 = vsel %vm1181, %v1113, 0.0
    %v1246 = vsel %vm1182, %v1112, 0.0
    %v1247 = vsel %vm1183, %v1113, 0.0
    %vm1248 = vcmp.ge.f32.partialorder %v1088, 0.0
    %vm1249 = vcmp.ge.f32.partialorder %v1089, 0.0
    %vm1250 = vcmp.le.f32.partialorder %v1088, 15.0
    %vm1251 = vcmp.le.f32.partialorder %v1089, 15.0
    %vm1252 = vmand %vm1248, %vm1250
    %vm1253 = vmand %vm1249, %vm1251
    %vm1254 = vmand %vm1252, %vm1104
    %vm1255 = vmand %vm1253, %vm1105
    %vm1256 = vmand %vm1254, %vm1108
    %vm1257 = vmand %vm1255, %vm1109
    %v1258 = vsel %vm1256, %v1090, 0.0
    %v1259 = vsel %vm1257, %v1091, 0.0
    %v1260 = vadd.f32 %v1114, %v1088
    %v1261 = vadd.f32 %v1115, %v1089
    %v1262 = vcvt.f32.s32.to.zero.pseudo %v1260
    %v1263 = vcvt.f32.s32.to.zero.pseudo %v1261
    %vm1264 = vcmp.eq.s32.totalorder %v40, %v1262
    %vm1265 = vcmp.eq.s32.totalorder %v40, %v1263
    %vm1266 = vcmp.eq.s32.totalorder %v41, %v1262
    %vm1267 = vcmp.eq.s32.totalorder %v41, %v1263
    %vm1268 = vcmp.eq.s32.totalorder %v42, %v1262
    %vm1269 = vcmp.eq.s32.totalorder %v42, %v1263
    %vm1270 = vcmp.eq.s32.totalorder %v43, %v1262
    %vm1271 = vcmp.eq.s32.totalorder %v43, %v1263
    %vm1272 = vcmp.eq.s32.totalorder %v44, %v1262
    %vm1273 = vcmp.eq.s32.totalorder %v44, %v1263
    %vm1274 = vcmp.eq.s32.totalorder %v45, %v1262
    %vm1275 = vcmp.eq.s32.totalorder %v45, %v1263
    %vm1276 = vcmp.eq.s32.totalorder %v46, %v1262
    %vm1277 = vcmp.eq.s32.totalorder %v46, %v1263
    %vm1278 = vcmp.eq.s32.totalorder %v47, %v1262
    %vm1279 = vcmp.eq.s32.totalorder %v47, %v1263
    %vm1280 = vcmp.eq.s32.totalorder %v48, %v1262
    %vm1281 = vcmp.eq.s32.totalorder %v48, %v1263
    %vm1282 = vcmp.eq.s32.totalorder %v49, %v1262
    %vm1283 = vcmp.eq.s32.totalorder %v49, %v1263
    %vm1284 = vcmp.eq.s32.totalorder %v50, %v1262
    %vm1285 = vcmp.eq.s32.totalorder %v50, %v1263
    %vm1286 = vcmp.eq.s32.totalorder %v51, %v1262
    %vm1287 = vcmp.eq.s32.totalorder %v51, %v1263
    %vm1288 = vcmp.eq.s32.totalorder %v52, %v1262
    %vm1289 = vcmp.eq.s32.totalorder %v52, %v1263
    %vm1290 = vcmp.eq.s32.totalorder %v53, %v1262
    %vm1291 = vcmp.eq.s32.totalorder %v53, %v1263
    %vm1292 = vcmp.eq.s32.totalorder %v54, %v1262
    %vm1293 = vcmp.eq.s32.totalorder %v54, %v1263
    %vm1294 = vcmp.eq.s32.totalorder %v55, %v1262
    %vm1295 = vcmp.eq.s32.totalorder %v55, %v1263
    %vm1296 = vcmp.eq.s32.totalorder %v56, %v1262
    %vm1297 = vcmp.eq.s32.totalorder %v56, %v1263
    %vm1298 = vcmp.eq.s32.totalorder %v57, %v1262
    %vm1299 = vcmp.eq.s32.totalorder %v57, %v1263
    %vm1300 = vcmp.eq.s32.totalorder %v58, %v1262
    %vm1301 = vcmp.eq.s32.totalorder %v58, %v1263
    %vm1302 = vcmp.eq.s32.totalorder %v59, %v1262
    %vm1303 = vcmp.eq.s32.totalorder %v59, %v1263
    %vm1304 = vcmp.eq.s32.totalorder %v60, %v1262
    %vm1305 = vcmp.eq.s32.totalorder %v60, %v1263
    %vm1306 = vcmp.eq.s32.totalorder %v61, %v1262
    %vm1307 = vcmp.eq.s32.totalorder %v61, %v1263
    %vm1308 = vcmp.eq.s32.totalorder %v62, %v1262
    %vm1309 = vcmp.eq.s32.totalorder %v62, %v1263
    %vm1310 = vcmp.eq.s32.totalorder %v63, %v1262
    %vm1311 = vcmp.eq.s32.totalorder %v63, %v1263
    %vm1312 = vcmp.eq.s32.totalorder %v64, %v1262
    %vm1313 = vcmp.eq.s32.totalorder %v64, %v1263
    %vm1314 = vcmp.eq.s32.totalorder %v65, %v1262
    %vm1315 = vcmp.eq.s32.totalorder %v65, %v1263
    %vm1316 = vcmp.eq.s32.totalorder %v66, %v1262
    %vm1317 = vcmp.eq.s32.totalorder %v66, %v1263
    %vm1318 = vcmp.eq.s32.totalorder %v67, %v1262
    %vm1319 = vcmp.eq.s32.totalorder %v67, %v1263
    %vm1320 = vcmp.eq.s32.totalorder %v68, %v1262
    %vm1321 = vcmp.eq.s32.totalorder %v68, %v1263
    %vm1322 = vcmp.eq.s32.totalorder %v69, %v1262
    %vm1323 = vcmp.eq.s32.totalorder %v69, %v1263
    %vm1324 = vcmp.eq.s32.totalorder %v70, %v1262
    %vm1325 = vcmp.eq.s32.totalorder %v70, %v1263
    %vm1326 = vcmp.eq.s32.totalorder %v71, %v1262
    %vm1327 = vcmp.eq.s32.totalorder %v71, %v1263
    %v1328 = vsel %vm1264, %v1258, 0.0
    %v1329 = vsel %vm1265, %v1259, 0.0
    %v1330 = vsel %vm1266, %v1258, 0.0
    %v1331 = vsel %vm1267, %v1259, 0.0
    %v1332 = vsel %vm1268, %v1258, 0.0
    %v1333 = vsel %vm1269, %v1259, 0.0
    %v1334 = vsel %vm1270, %v1258, 0.0
    %v1335 = vsel %vm1271, %v1259, 0.0
    %v1336 = vsel %vm1272, %v1258, 0.0
    %v1337 = vsel %vm1273, %v1259, 0.0
    %v1338 = vsel %vm1274, %v1258, 0.0
    %v1339 = vsel %vm1275, %v1259, 0.0
    %v1340 = vsel %vm1276, %v1258, 0.0
    %v1341 = vsel %vm1277, %v1259, 0.0
    %v1342 = vsel %vm1278, %v1258, 0.0
    %v1343 = vsel %vm1279, %v1259, 0.0
    %v1344 = vsel %vm1280, %v1258, 0.0
    %v1345 = vsel %vm1281, %v1259, 0.0
    %v1346 = vsel %vm1282, %v1258, 0.0
    %v1347 = vsel %vm1283, %v1259, 0.0
    %v1348 = vsel %vm1284, %v1258, 0.0
    %v1349 = vsel %vm1285, %v1259, 0.0
    %v1350 = vsel %vm1286, %v1258, 0.0
    %v1351 = vsel %vm1287, %v1259, 0.0
    %v1352 = vsel %vm1288, %v1258, 0.0
    %v1353 = vsel %vm1289, %v1259, 0.0
    %v1354 = vsel %vm1290, %v1258, 0.0
    %v1355 = vsel %vm1291, %v1259, 0.0
    %v1356 = vsel %vm1292, %v1258, 0.0
    %v1357 = vsel %vm1293, %v1259, 0.0
    %v1358 = vsel %vm1294, %v1258, 0.0
    %v1359 = vsel %vm1295, %v1259, 0.0
    %v1360 = vsel %vm1296, %v1258, 0.0
    %v1361 = vsel %vm1297, %v1259, 0.0
    %v1362 = vsel %vm1298, %v1258, 0.0
    %v1363 = vsel %vm1299, %v1259, 0.0
    %v1364 = vsel %vm1300, %v1258, 0.0
    %v1365 = vsel %vm1301, %v1259, 0.0
    %v1366 = vsel %vm1302, %v1258, 0.0
    %v1367 = vsel %vm1303, %v1259, 0.0
    %v1368 = vsel %vm1304, %v1258, 0.0
    %v1369 = vsel %vm1305, %v1259, 0.0
    %v1370 = vsel %vm1306, %v1258, 0.0
    %v1371 = vsel %vm1307, %v1259, 0.0
    %v1372 = vsel %vm1308, %v1258, 0.0
    %v1373 = vsel %vm1309, %v1259, 0.0
    %v1374 = vsel %vm1310, %v1258, 0.0
    %v1375 = vsel %vm1311, %v1259, 0.0
    %v1376 = vsel %vm1312, %v1258, 0.0
    %v1377 = vsel %vm1313, %v1259, 0.0
    %v1378 = vsel %vm1314, %v1258, 0.0
    %v1379 = vsel %vm1315, %v1259, 0.0
    %v1380 = vsel %vm1316, %v1258, 0.0
    %v1381 = vsel %vm1317, %v1259, 0.0
    %v1382 = vsel %vm1318, %v1258, 0.0
    %v1383 = vsel %vm1319, %v1259, 0.0
    %v1384 = vsel %vm1320, %v1258, 0.0
    %v1385 = vsel %vm1321, %v1259, 0.0
    %v1386 = vsel %vm1322, %v1258, 0.0
    %v1387 = vsel %vm1323, %v1259, 0.0
    %v1388 = vsel %vm1324, %v1258, 0.0
    %v1389 = vsel %vm1325, %v1259, 0.0
    %v1390 = vsel %vm1326, %v1258, 0.0
    %v1391 = vsel %vm1327, %v1259, 0.0
    %v1392 = vadd.f32 %v1184, %v1328
    %v1393 = vadd.f32 %v1185, %v1329
    %v1394 = vadd.f32 %v1186, %v1330
    %v1395 = vadd.f32 %v1187, %v1331
    %v1396 = vadd.f32 %v1188, %v1332
    %v1397 = vadd.f32 %v1189, %v1333
    %v1398 = vadd.f32 %v1190, %v1334
    %v1399 = vadd.f32 %v1191, %v1335
    %v1400 = vadd.f32 %v1192, %v1336
    %v1401 = vadd.f32 %v1193, %v1337
    %v1402 = vadd.f32 %v1194, %v1338
    %v1403 = vadd.f32 %v1195, %v1339
    %v1404 = vadd.f32 %v1196, %v1340
    %v1405 = vadd.f32 %v1197, %v1341
    %v1406 = vadd.f32 %v1198, %v1342
    %v1407 = vadd.f32 %v1199, %v1343
    %v1408 = vadd.f32 %v1200, %v1344
    %v1409 = vadd.f32 %v1201, %v1345
    %v1410 = vadd.f32 %v1202, %v1346
    %v1411 = vadd.f32 %v1203, %v1347
    %v1412 = vadd.f32 %v1204, %v1348
    %v1413 = vadd.f32 %v1205, %v1349
    %v1414 = vadd.f32 %v1206, %v1350
    %v1415 = vadd.f32 %v1207, %v1351
    %v1416 = vadd.f32 %v1208, %v1352
    %v1417 = vadd.f32 %v1209, %v1353
    %v1418 = vadd.f32 %v1210, %v1354
    %v1419 = vadd.f32 %v1211, %v1355
    %v1420 = vadd.f32 %v1212, %v1356
    %v1421 = vadd.f32 %v1213, %v1357
    %v1422 = vadd.f32 %v1214, %v1358
    %v1423 = vadd.f32 %v1215, %v1359
    %v1424 = vadd.f32 %v1216, %v1360
    %v1425 = vadd.f32 %v1217, %v1361
    %v1426 = vadd.f32 %v1218, %v1362
    %v1427 = vadd.f32 %v1219, %v1363
    %v1428 = vadd.f32 %v1220, %v1364
    %v1429 = vadd.f32 %v1221, %v1365
    %v1430 = vadd.f32 %v1222, %v1366
    %v1431 = vadd.f32 %v1223, %v1367
    %v1432 = vadd.f32 %v1224, %v1368
    %v1433 = vadd.f32 %v1225, %v1369
    %v1434 = vadd.f32 %v1226, %v1370
    %v1435 = vadd.f32 %v1227, %v1371
    %v1436 = vadd.f32 %v1228, %v1372
    %v1437 = vadd.f32 %v1229, %v1373
    %v1438 = vadd.f32 %v1230, %v1374
    %v1439 = vadd.f32 %v1231, %v1375
    %v1440 = vadd.f32 %v1232, %v1376
    %v1441 = vadd.f32 %v1233, %v1377
    %v1442 = vadd.f32 %v1234, %v1378
    %v1443 = vadd.f32 %v1235, %v1379
    %v1444 = vadd.f32 %v1236, %v1380
    %v1445 = vadd.f32 %v1237, %v1381
    %v1446 = vadd.f32 %v1238, %v1382
    %v1447 = vadd.f32 %v1239, %v1383
    %v1448 = vadd.f32 %v1240, %v1384
    %v1449 = vadd.f32 %v1241, %v1385
    %v1450 = vadd.f32 %v1242, %v1386
    %v1451 = vadd.f32 %v1243, %v1387
    %v1452 = vadd.f32 %v1244, %v1388
    %v1453 = vadd.f32 %v1245, %v1389
    %v1454 = vadd.f32 %v1246, %v1390
    %v1455 = vadd.f32 %v1247, %v1391
    %vm1456 = vcmp.ge.f32.partialorder %v1092, 0.0
    %vm1457 = vcmp.ge.f32.partialorder %v1093, 0.0
    %vm1458 = vmand %vm1102, %vm1456
    %vm1459 = vmand %vm1103, %vm1457
    %vm1460 = vcmp.le.f32.partialorder %v1092, 15.0
    %vm1461 = vcmp.le.f32.partialorder %v1093, 15.0
    %vm1462 = vmand %vm1458, %vm1460
    %vm1463 = vmand %vm1459, %vm1461
    %v1464 = vsel %vm1462, %v1094, 0.0
    %v1465 = vsel %vm1463, %v1095, 0.0
    %v1466 = vmul.f32 %v1092, 16.0
    %v1467 = vmul.f32 %v1093, 16.0
    %v1468 = vadd.f32 %v1466, %v1074
    %v1469 = vadd.f32 %v1467, %v1075
    %v1470 = vcvt.f32.s32.to.zero.pseudo %v1468
    %v1471 = vcvt.f32.s32.to.zero.pseudo %v1469
    %vm1472 = vcmp.eq.s32.totalorder %v40, %v1470
    %vm1473 = vcmp.eq.s32.totalorder %v40, %v1471
    %vm1474 = vcmp.eq.s32.totalorder %v41, %v1470
    %vm1475 = vcmp.eq.s32.totalorder %v41, %v1471
    %vm1476 = vcmp.eq.s32.totalorder %v42, %v1470
    %vm1477 = vcmp.eq.s32.totalorder %v42, %v1471
    %vm1478 = vcmp.eq.s32.totalorder %v43, %v1470
    %vm1479 = vcmp.eq.s32.totalorder %v43, %v1471
    %vm1480 = vcmp.eq.s32.totalorder %v44, %v1470
    %vm1481 = vcmp.eq.s32.totalorder %v44, %v1471
    %vm1482 = vcmp.eq.s32.totalorder %v45, %v1470
    %vm1483 = vcmp.eq.s32.totalorder %v45, %v1471
    %vm1484 = vcmp.eq.s32.totalorder %v46, %v1470
    %vm1485 = vcmp.eq.s32.totalorder %v46, %v1471
    %vm1486 = vcmp.eq.s32.totalorder %v47, %v1470
    %vm1487 = vcmp.eq.s32.totalorder %v47, %v1471
    %vm1488 = vcmp.eq.s32.totalorder %v48, %v1470
    %vm1489 = vcmp.eq.s32.totalorder %v48, %v1471
    %vm1490 = vcmp.eq.s32.totalorder %v49, %v1470
    %vm1491 = vcmp.eq.s32.totalorder %v49, %v1471
    %vm1492 = vcmp.eq.s32.totalorder %v50, %v1470
    %vm1493 = vcmp.eq.s32.totalorder %v50, %v1471
    %vm1494 = vcmp.eq.s32.totalorder %v51, %v1470
    %vm1495 = vcmp.eq.s32.totalorder %v51, %v1471
    %vm1496 = vcmp.eq.s32.totalorder %v52, %v1470
    %vm1497 = vcmp.eq.s32.totalorder %v52, %v1471
    %vm1498 = vcmp.eq.s32.totalorder %v53, %v1470
    %vm1499 = vcmp.eq.s32.totalorder %v53, %v1471
    %vm1500 = vcmp.eq.s32.totalorder %v54, %v1470
    %vm1501 = vcmp.eq.s32.totalorder %v54, %v1471
    %vm1502 = vcmp.eq.s32.totalorder %v55, %v1470
    %vm1503 = vcmp.eq.s32.totalorder %v55, %v1471
    %vm1504 = vcmp.eq.s32.totalorder %v56, %v1470
    %vm1505 = vcmp.eq.s32.totalorder %v56, %v1471
    %vm1506 = vcmp.eq.s32.totalorder %v57, %v1470
    %vm1507 = vcmp.eq.s32.totalorder %v57, %v1471
    %vm1508 = vcmp.eq.s32.totalorder %v58, %v1470
    %vm1509 = vcmp.eq.s32.totalorder %v58, %v1471
    %vm1510 = vcmp.eq.s32.totalorder %v59, %v1470
    %vm1511 = vcmp.eq.s32.totalorder %v59, %v1471
    %vm1512 = vcmp.eq.s32.totalorder %v60, %v1470
    %vm1513 = vcmp.eq.s32.totalorder %v60, %v1471
    %vm1514 = vcmp.eq.s32.totalorder %v61, %v1470
    %vm1515 = vcmp.eq.s32.totalorder %v61, %v1471
    %vm1516 = vcmp.eq.s32.totalorder %v62, %v1470
    %vm1517 = vcmp.eq.s32.totalorder %v62, %v1471
    %vm1518 = vcmp.eq.s32.totalorder %v63, %v1470
    %vm1519 = vcmp.eq.s32.totalorder %v63, %v1471
    %vm1520 = vcmp.eq.s32.totalorder %v64, %v1470
    %vm1521 = vcmp.eq.s32.totalorder %v64, %v1471
    %vm1522 = vcmp.eq.s32.totalorder %v65, %v1470
    %vm1523 = vcmp.eq.s32.totalorder %v65, %v1471
    %vm1524 = vcmp.eq.s32.totalorder %v66, %v1470
    %vm1525 = vcmp.eq.s32.totalorder %v66, %v1471
    %vm1526 = vcmp.eq.s32.totalorder %v67, %v1470
    %vm1527 = vcmp.eq.s32.totalorder %v67, %v1471
    %vm1528 = vcmp.eq.s32.totalorder %v68, %v1470
    %vm1529 = vcmp.eq.s32.totalorder %v68, %v1471
    %vm1530 = vcmp.eq.s32.totalorder %v69, %v1470
    %vm1531 = vcmp.eq.s32.totalorder %v69, %v1471
    %vm1532 = vcmp.eq.s32.totalorder %v70, %v1470
    %vm1533 = vcmp.eq.s32.totalorder %v70, %v1471
    %vm1534 = vcmp.eq.s32.totalorder %v71, %v1470
    %vm1535 = vcmp.eq.s32.totalorder %v71, %v1471
    %v1536 = vsel %vm1472, %v1464, 0.0
    %v1537 = vsel %vm1473, %v1465, 0.0
    %v1538 = vsel %vm1474, %v1464, 0.0
    %v1539 = vsel %vm1475, %v1465, 0.0
    %v1540 = vsel %vm1476, %v1464, 0.0
    %v1541 = vsel %vm1477, %v1465, 0.0
    %v1542 = vsel %vm1478, %v1464, 0.0
    %v1543 = vsel %vm1479, %v1465, 0.0
    %v1544 = vsel %vm1480, %v1464, 0.0
    %v1545 = vsel %vm1481, %v1465, 0.0
    %v1546 = vsel %vm1482, %v1464, 0.0
    %v1547 = vsel %vm1483, %v1465, 0.0
    %v1548 = vsel %vm1484, %v1464, 0.0
    %v1549 = vsel %vm1485, %v1465, 0.0
    %v1550 = vsel %vm1486, %v1464, 0.0
    %v1551 = vsel %vm1487, %v1465, 0.0
    %v1552 = vsel %vm1488, %v1464, 0.0
    %v1553 = vsel %vm1489, %v1465, 0.0
    %v1554 = vsel %vm1490, %v1464, 0.0
    %v1555 = vsel %vm1491, %v1465, 0.0
    %v1556 = vsel %vm1492, %v1464, 0.0
    %v1557 = vsel %vm1493, %v1465, 0.0
    %v1558 = vsel %vm1494, %v1464, 0.0
    %v1559 = vsel %vm1495, %v1465, 0.0
    %v1560 = vsel %vm1496, %v1464, 0.0
    %v1561 = vsel %vm1497, %v1465, 0.0
    %v1562 = vsel %vm1498, %v1464, 0.0
    %v1563 = vsel %vm1499, %v1465, 0.0
    %v1564 = vsel %vm1500, %v1464, 0.0
    %v1565 = vsel %vm1501, %v1465, 0.0
    %v1566 = vsel %vm1502, %v1464, 0.0
    %v1567 = vsel %vm1503, %v1465, 0.0
    %v1568 = vsel %vm1504, %v1464, 0.0
    %v1569 = vsel %vm1505, %v1465, 0.0
    %v1570 = vsel %vm1506, %v1464, 0.0
    %v1571 = vsel %vm1507, %v1465, 0.0
    %v1572 = vsel %vm1508, %v1464, 0.0
    %v1573 = vsel %vm1509, %v1465, 0.0
    %v1574 = vsel %vm1510, %v1464, 0.0
    %v1575 = vsel %vm1511, %v1465, 0.0
    %v1576 = vsel %vm1512, %v1464, 0.0
    %v1577 = vsel %vm1513, %v1465, 0.0
    %v1578 = vsel %vm1514, %v1464, 0.0
    %v1579 = vsel %vm1515, %v1465, 0.0
    %v1580 = vsel %vm1516, %v1464, 0.0
    %v1581 = vsel %vm1517, %v1465, 0.0
    %v1582 = vsel %vm1518, %v1464, 0.0
    %v1583 = vsel %vm1519, %v1465, 0.0
    %v1584 = vsel %vm1520, %v1464, 0.0
    %v1585 = vsel %vm1521, %v1465, 0.0
    %v1586 = vsel %vm1522, %v1464, 0.0
    %v1587 = vsel %vm1523, %v1465, 0.0
    %v1588 = vsel %vm1524, %v1464, 0.0
    %v1589 = vsel %vm1525, %v1465, 0.0
    %v1590 = vsel %vm1526, %v1464, 0.0
    %v1591 = vsel %vm1527, %v1465, 0.0
    %v1592 = vsel %vm1528, %v1464, 0.0
    %v1593 = vsel %vm1529, %v1465, 0.0
    %v1594 = vsel %vm1530, %v1464, 0.0
    %v1595 = vsel %vm1531, %v1465, 0.0
    %v1596 = vsel %vm1532, %v1464, 0.0
    %v1597 = vsel %vm1533, %v1465, 0.0
    %v1598 = vsel %vm1534, %v1464, 0.0
    %v1599 = vsel %vm1535, %v1465, 0.0
    %v1600 = vadd.f32 %v1392, %v1536
    %v1601 = vadd.f32 %v1393, %v1537
    %v1602 = vadd.f32 %v1394, %v1538
    %v1603 = vadd.f32 %v1395, %v1539
    %v1604 = vadd.f32 %v1396, %v1540
    %v1605 = vadd.f32 %v1397, %v1541
    %v1606 = vadd.f32 %v1398, %v1542
    %v1607 = vadd.f32 %v1399, %v1543
    %v1608 = vadd.f32 %v1400, %v1544
    %v1609 = vadd.f32 %v1401, %v1545
    %v1610 = vadd.f32 %v1402, %v1546
    %v1611 = vadd.f32 %v1403, %v1547
    %v1612 = vadd.f32 %v1404, %v1548
    %v1613 = vadd.f32 %v1405, %v1549
    %v1614 = vadd.f32 %v1406, %v1550
    %v1615 = vadd.f32 %v1407, %v1551
    %v1616 = vadd.f32 %v1408, %v1552
    %v1617 = vadd.f32 %v1409, %v1553
    %v1618 = vadd.f32 %v1410, %v1554
    %v1619 = vadd.f32 %v1411, %v1555
    %v1620 = vadd.f32 %v1412, %v1556
    %v1621 = vadd.f32 %v1413, %v1557
    %v1622 = vadd.f32 %v1414, %v1558
    %v1623 = vadd.f32 %v1415, %v1559
    %v1624 = vadd.f32 %v1416, %v1560
    %v1625 = vadd.f32 %v1417, %v1561
    %v1626 = vadd.f32 %v1418, %v1562
    %v1627 = vadd.f32 %v1419, %v1563
    %v1628 = vadd.f32 %v1420, %v1564
    %v1629 = vadd.f32 %v1421, %v1565
    %v1630 = vadd.f32 %v1422, %v1566
    %v1631 = vadd.f32 %v1423, %v1567
    %v1632 = vadd.f32 %v1424, %v1568
    %v1633 = vadd.f32 %v1425, %v1569
    %v1634 = vadd.f32 %v1426, %v1570
    %v1635 = vadd.f32 %v1427, %v1571
    %v1636 = vadd.f32 %v1428, %v1572
    %v1637 = vadd.f32 %v1429, %v1573
    %v1638 = vadd.f32 %v1430, %v1574
    %v1639 = vadd.f32 %v1431, %v1575
    %v1640 = vadd.f32 %v1432, %v1576
    %v1641 = vadd.f32 %v1433, %v1577
    %v1642 = vadd.f32 %v1434, %v1578
    %v1643 = vadd.f32 %v1435, %v1579
    %v1644 = vadd.f32 %v1436, %v1580
    %v1645 = vadd.f32 %v1437, %v1581
    %v1646 = vadd.f32 %v1438, %v1582
    %v1647 = vadd.f32 %v1439, %v1583
    %v1648 = vadd.f32 %v1440, %v1584
    %v1649 = vadd.f32 %v1441, %v1585
    %v1650 = vadd.f32 %v1442, %v1586
    %v1651 = vadd.f32 %v1443, %v1587
    %v1652 = vadd.f32 %v1444, %v1588
    %v1653 = vadd.f32 %v1445, %v1589
    %v1654 = vadd.f32 %v1446, %v1590
    %v1655 = vadd.f32 %v1447, %v1591
    %v1656 = vadd.f32 %v1448, %v1592
    %v1657 = vadd.f32 %v1449, %v1593
    %v1658 = vadd.f32 %v1450, %v1594
    %v1659 = vadd.f32 %v1451, %v1595
    %v1660 = vadd.f32 %v1452, %v1596
    %v1661 = vadd.f32 %v1453, %v1597
    %v1662 = vadd.f32 %v1454, %v1598
    %v1663 = vadd.f32 %v1455, %v1599
    %vm1664 = vmand %vm1252, %vm1456
    %vm1665 = vmand %vm1253, %vm1457
    %vm1666 = vmand %vm1664, %vm1460
    %vm1667 = vmand %vm1665, %vm1461
    %v1668 = vsel %vm1666, %v1096, 0.0
    %v1669 = vsel %vm1667, %v1097, 0.0
    %v1670 = vadd.f32 %v1466, %v1088
    %v1671 = vadd.f32 %v1467, %v1089
    %v1672 = vcvt.f32.s32.to.zero.pseudo %v1670
    %v1673 = vcvt.f32.s32.to.zero.pseudo %v1671
    %vm1674 = vcmp.eq.s32.totalorder %v40, %v1672
    %vm1675 = vcmp.eq.s32.totalorder %v40, %v1673
    %vm1676 = vcmp.eq.s32.totalorder %v41, %v1672
    %vm1677 = vcmp.eq.s32.totalorder %v41, %v1673
    %vm1678 = vcmp.eq.s32.totalorder %v42, %v1672
    %vm1679 = vcmp.eq.s32.totalorder %v42, %v1673
    %vm1680 = vcmp.eq.s32.totalorder %v43, %v1672
    %vm1681 = vcmp.eq.s32.totalorder %v43, %v1673
    %vm1682 = vcmp.eq.s32.totalorder %v44, %v1672
    %vm1683 = vcmp.eq.s32.totalorder %v44, %v1673
    %vm1684 = vcmp.eq.s32.totalorder %v45, %v1672
    %vm1685 = vcmp.eq.s32.totalorder %v45, %v1673
    %vm1686 = vcmp.eq.s32.totalorder %v46, %v1672
    %vm1687 = vcmp.eq.s32.totalorder %v46, %v1673
    %vm1688 = vcmp.eq.s32.totalorder %v47, %v1672
    %vm1689 = vcmp.eq.s32.totalorder %v47, %v1673
    %vm1690 = vcmp.eq.s32.totalorder %v48, %v1672
    %vm1691 = vcmp.eq.s32.totalorder %v48, %v1673
    %vm1692 = vcmp.eq.s32.totalorder %v49, %v1672
    %vm1693 = vcmp.eq.s32.totalorder %v49, %v1673
    %vm1694 = vcmp.eq.s32.totalorder %v50, %v1672
    %vm1695 = vcmp.eq.s32.totalorder %v50, %v1673
    %vm1696 = vcmp.eq.s32.totalorder %v51, %v1672
    %vm1697 = vcmp.eq.s32.totalorder %v51, %v1673
    %vm1698 = vcmp.eq.s32.totalorder %v52, %v1672
    %vm1699 = vcmp.eq.s32.totalorder %v52, %v1673
    %vm1700 = vcmp.eq.s32.totalorder %v53, %v1672
    %vm1701 = vcmp.eq.s32.totalorder %v53, %v1673
    %vm1702 = vcmp.eq.s32.totalorder %v54, %v1672
    %vm1703 = vcmp.eq.s32.totalorder %v54, %v1673
    %vm1704 = vcmp.eq.s32.totalorder %v55, %v1672
    %vm1705 = vcmp.eq.s32.totalorder %v55, %v1673
    %vm1706 = vcmp.eq.s32.totalorder %v56, %v1672
    %vm1707 = vcmp.eq.s32.totalorder %v56, %v1673
    %vm1708 = vcmp.eq.s32.totalorder %v57, %v1672
    %vm1709 = vcmp.eq.s32.totalorder %v57, %v1673
    %vm1710 = vcmp.eq.s32.totalorder %v58, %v1672
    %vm1711 = vcmp.eq.s32.totalorder %v58, %v1673
    %vm1712 = vcmp.eq.s32.totalorder %v59, %v1672
    %vm1713 = vcmp.eq.s32.totalorder %v59, %v1673
    %vm1714 = vcmp.eq.s32.totalorder %v60, %v1672
    %vm1715 = vcmp.eq.s32.totalorder %v60, %v1673
    %vm1716 = vcmp.eq.s32.totalorder %v61, %v1672
    %vm1717 = vcmp.eq.s32.totalorder %v61, %v1673
    %vm1718 = vcmp.eq.s32.totalorder %v62, %v1672
    %vm1719 = vcmp.eq.s32.totalorder %v62, %v1673
    %vm1720 = vcmp.eq.s32.totalorder %v63, %v1672
    %vm1721 = vcmp.eq.s32.totalorder %v63, %v1673
    %vm1722 = vcmp.eq.s32.totalorder %v64, %v1672
    %vm1723 = vcmp.eq.s32.totalorder %v64, %v1673
    %vm1724 = vcmp.eq.s32.totalorder %v65, %v1672
    %vm1725 = vcmp.eq.s32.totalorder %v65, %v1673
    %vm1726 = vcmp.eq.s32.totalorder %v66, %v1672
    %vm1727 = vcmp.eq.s32.totalorder %v66, %v1673
    %vm1728 = vcmp.eq.s32.totalorder %v67, %v1672
    %vm1729 = vcmp.eq.s32.totalorder %v67, %v1673
    %vm1730 = vcmp.eq.s32.totalorder %v68, %v1672
    %vm1731 = vcmp.eq.s32.totalorder %v68, %v1673
    %vm1732 = vcmp.eq.s32.totalorder %v69, %v1672
    %vm1733 = vcmp.eq.s32.totalorder %v69, %v1673
    %vm1734 = vcmp.eq.s32.totalorder %v70, %v1672
    %vm1735 = vcmp.eq.s32.totalorder %v70, %v1673
    %vm1736 = vcmp.eq.s32.totalorder %v71, %v1672
    %vm1737 = vcmp.eq.s32.totalorder %v71, %v1673
    %v1738 = vsel %vm1674, %v1668, 0.0
    %v1739 = vsel %vm1675, %v1669, 0.0
    %v1740 = vsel %vm1676, %v1668, 0.0
    %v1741 = vsel %vm1677, %v1669, 0.0
    %v1742 = vsel %vm1678, %v1668, 0.0
    %v1743 = vsel %vm1679, %v1669, 0.0
    %v1744 = vsel %vm1680, %v1668, 0.0
    %v1745 = vsel %vm1681, %v1669, 0.0
    %v1746 = vsel %vm1682, %v1668, 0.0
    %v1747 = vsel %vm1683, %v1669, 0.0
    %v1748 = vsel %vm1684, %v1668, 0.0
    %v1749 = vsel %vm1685, %v1669, 0.0
    %v1750 = vsel %vm1686, %v1668, 0.0
    %v1751 = vsel %vm1687, %v1669, 0.0
    %v1752 = vsel %vm1688, %v1668, 0.0
    %v1753 = vsel %vm1689, %v1669, 0.0
    %v1754 = vsel %vm1690, %v1668, 0.0
    %v1755 = vsel %vm1691, %v1669, 0.0
    %v1756 = vsel %vm1692, %v1668, 0.0
    %v1757 = vsel %vm1693, %v1669, 0.0
    %v1758 = vsel %vm1694, %v1668, 0.0
    %v1759 = vsel %vm1695, %v1669, 0.0
    %v1760 = vsel %vm1696, %v1668, 0.0
    %v1761 = vsel %vm1697, %v1669, 0.0
    %v1762 = vsel %vm1698, %v1668, 0.0
    %v1763 = vsel %vm1699, %v1669, 0.0
    %v1764 = vsel %vm1700, %v1668, 0.0
    %v1765 = vsel %vm1701, %v1669, 0.0
    %v1766 = vsel %vm1702, %v1668, 0.0
    %v1767 = vsel %vm1703, %v1669, 0.0
    %v1768 = vsel %vm1704, %v1668, 0.0
    %v1769 = vsel %vm1705, %v1669, 0.0
    %v1770 = vsel %vm1706, %v1668, 0.0
    %v1771 = vsel %vm1707, %v1669, 0.0
    %v1772 = vsel %vm1708, %v1668, 0.0
    %v1773 = vsel %vm1709, %v1669, 0.0
    %v1774 = vsel %vm1710, %v1668, 0.0
    %v1775 = vsel %vm1711, %v1669, 0.0
    %v1776 = vsel %vm1712, %v1668, 0.0
    %v1777 = vsel %vm1713, %v1669, 0.0
    %v1778 = vsel %vm1714, %v1668, 0.0
    %v1779 = vsel %vm1715, %v1669, 0.0
    %v1780 = vsel %vm1716, %v1668, 0.0
    %v1781 = vsel %vm1717, %v1669, 0.0
    %v1782 = vsel %vm1718, %v1668, 0.0
    %v1783 = vsel %vm1719, %v1669, 0.0
    %v1784 = vsel %vm1720, %v1668, 0.0
    %v1785 = vsel %vm1721, %v1669, 0.0
    %v1786 = vsel %vm1722, %v1668, 0.0
    %v1787 = vsel %vm1723, %v1669, 0.0
    %v1788 = vsel %vm1724, %v1668, 0.0
    %v1789 = vsel %vm1725, %v1669, 0.0
    %v1790 = vsel %vm1726, %v1668, 0.0
    %v1791 = vsel %vm1727, %v1669, 0.0
    %v1792 = vsel %vm1728, %v1668, 0.0
    %v1793 = vsel %vm1729, %v1669, 0.0
    %v1794 = vsel %vm1730, %v1668, 0.0
    %v1795 = vsel %vm1731, %v1669, 0.0
    %v1796 = vsel %vm1732, %v1668, 0.0
    %v1797 = vsel %vm1733, %v1669, 0.0
    %v1798 = vsel %vm1734, %v1668, 0.0
    %v1799 = vsel %vm1735, %v1669, 0.0
    %v1800 = vsel %vm1736, %v1668, 0.0
    %v1801 = vsel %vm1737, %v1669, 0.0
    %v1802 = vadd.f32 %v1600, %v1738
    %v1803 = vadd.f32 %v1601, %v1739
    %v1804 = vadd.f32 %v1602, %v1740
    %v1805 = vadd.f32 %v1603, %v1741
    %v1806 = vadd.f32 %v1604, %v1742
    %v1807 = vadd.f32 %v1605, %v1743
    %v1808 = vadd.f32 %v1606, %v1744
    %v1809 = vadd.f32 %v1607, %v1745
    %v1810 = vadd.f32 %v1608, %v1746
    %v1811 = vadd.f32 %v1609, %v1747
    %v1812 = vadd.f32 %v1610, %v1748
    %v1813 = vadd.f32 %v1611, %v1749
    %v1814 = vadd.f32 %v1612, %v1750
    %v1815 = vadd.f32 %v1613, %v1751
    %v1816 = vadd.f32 %v1614, %v1752
    %v1817 = vadd.f32 %v1615, %v1753
    %v1818 = vadd.f32 %v1616, %v1754
    %v1819 = vadd.f32 %v1617, %v1755
    %v1820 = vadd.f32 %v1618, %v1756
    %v1821 = vadd.f32 %v1619, %v1757
    %v1822 = vadd.f32 %v1620, %v1758
    %v1823 = vadd.f32 %v1621, %v1759
    %v1824 = vadd.f32 %v1622, %v1760
    %v1825 = vadd.f32 %v1623, %v1761
    %v1826 = vadd.f32 %v1624, %v1762
    %v1827 = vadd.f32 %v1625, %v1763
    %v1828 = vadd.f32 %v1626, %v1764
    %v1829 = vadd.f32 %v1627, %v1765
    %v1830 = vadd.f32 %v1628, %v1766
    %v1831 = vadd.f32 %v1629, %v1767
    %v1832 = vadd.f32 %v1630, %v1768
    %v1833 = vadd.f32 %v1631, %v1769
    %v1834 = vadd.f32 %v1632, %v1770
    %v1835 = vadd.f32 %v1633, %v1771
    %v1836 = vadd.f32 %v1634, %v1772
    %v1837 = vadd.f32 %v1635, %v1773
    %v1838 = vadd.f32 %v1636, %v1774
    %v1839 = vadd.f32 %v1637, %v1775
    %v1840 = vadd.f32 %v1638, %v1776
    %v1841 = vadd.f32 %v1639, %v1777
    %v1842 = vadd.f32 %v1640, %v1778
    %v1843 = vadd.f32 %v1641, %v1779
    %v1844 = vadd.f32 %v1642, %v1780
    %v1845 = vadd.f32 %v1643, %v1781
    %v1846 = vadd.f32 %v1644, %v1782
    %v1847 = vadd.f32 %v1645, %v1783
    %v1848 = vadd.f32 %v1646, %v1784
    %v1849 = vadd.f32 %v1647, %v1785
    %v1850 = vadd.f32 %v1648, %v1786
    %v1851 = vadd.f32 %v1649, %v1787
    %v1852 = vadd.f32 %v1650, %v1788
    %v1853 = vadd.f32 %v1651, %v1789
    %v1854 = vadd.f32 %v1652, %v1790
    %v1855 = vadd.f32 %v1653, %v1791
    %v1856 = vadd.f32 %v1654, %v1792
    %v1857 = vadd.f32 %v1655, %v1793
    %v1858 = vadd.f32 %v1656, %v1794
    %v1859 = vadd.f32 %v1657, %v1795
    %v1860 = vadd.f32 %v1658, %v1796
    %v1861 = vadd.f32 %v1659, %v1797
    %v1862 = vadd.f32 %v1660, %v1798
    %v1863 = vadd.f32 %v1661, %v1799
    %v1864 = vadd.f32 %v1662, %v1800
    %v1865 = vadd.f32 %v1663, %v1801
    %1866 = vmatprep.subr.mxu0 %v1803
    %1867 = vmatpush1.msra.mxu0 %v1802
    %1868 = vmatprep.subr.mxu0 %v1805
    %1869 = vmatpush1.msra.mxu0 %v1804
    %1870 = vmatprep.subr.mxu0 %v1807
    %1871 = vmatpush1.msra.mxu0 %v1806
    %1872 = vmatprep.subr.mxu0 %v1809
    %1873 = vmatpush1.msra.mxu0 %v1808
    %1874 = vmatprep.subr.mxu0 %v1811
    %1875 = vmatpush1.msra.mxu0 %v1810
    %1876 = vmatprep.subr.mxu0 %v1813
    %1877 = vmatpush1.msra.mxu0 %v1812
    %1878 = vmatprep.subr.mxu0 %v1815
    %1879 = vmatpush1.msra.mxu0 %v1814
    %1880 = vmatprep.subr.mxu0 %v1817
    %1881 = vmatpush1.msra.mxu0 %v1816
    %1882 = vmatprep.subr.mxu0 %v1819
    %1883 = vmatpush1.msra.mxu0 %v1818
    %1884 = vmatprep.subr.mxu0 %v1821
    %1885 = vmatpush1.msra.mxu0 %v1820
    %1886 = vmatprep.subr.mxu0 %v1823
    %1887 = vmatpush1.msra.mxu0 %v1822
    %1888 = vmatprep.subr.mxu0 %v1825
    %1889 = vmatpush1.msra.mxu0 %v1824
    %1890 = vmatprep.subr.mxu0 %v1827
    %1891 = vmatpush1.msra.mxu0 %v1826
    %1892 = vmatprep.subr.mxu0 %v1829
    %1893 = vmatpush1.msra.mxu0 %v1828
    %1894 = vmatprep.subr.mxu0 %v1831
    %1895 = vmatpush1.msra.mxu0 %v1830
    %1896 = vmatprep.subr.mxu0 %v1833
    %1897 = vmatpush1.msra.mxu0 %v1832
    %1898 = vmatprep.subr.mxu0 %v1835
    %1899 = vmatpush1.msra.mxu0 %v1834
    %1900 = vmatprep.subr.mxu0 %v1837
    %1901 = vmatpush1.msra.mxu0 %v1836
    %1902 = vmatprep.subr.mxu0 %v1839
    %1903 = vmatpush1.msra.mxu0 %v1838
    %1904 = vmatprep.subr.mxu0 %v1841
    %1905 = vmatpush1.msra.mxu0 %v1840
    %1906 = vmatprep.subr.mxu0 %v1843
    %1907 = vmatpush1.msra.mxu0 %v1842
    %1908 = vmatprep.subr.mxu0 %v1845
    %1909 = vmatpush1.msra.mxu0 %v1844
    %1910 = vmatprep.subr.mxu0 %v1847
    %1911 = vmatpush1.msra.mxu0 %v1846
    %1912 = vmatprep.subr.mxu0 %v1849
    %1913 = vmatpush1.msra.mxu0 %v1848
    %1914 = vmatprep.subr.mxu0 %v1851
    %1915 = vmatpush1.msra.mxu0 %v1850
    %1916 = vmatprep.subr.mxu0 %v1853
    %1917 = vmatpush1.msra.mxu0 %v1852
    %1918 = vmatprep.subr.mxu0 %v1855
    %1919 = vmatpush1.msra.mxu0 %v1854
    %1920 = vmatprep.subr.mxu0 %v1857
    %1921 = vmatpush1.msra.mxu0 %v1856
    %1922 = vmatprep.subr.mxu0 %v1859
    %1923 = vmatpush1.msra.mxu0 %v1858
    %1924 = vmatprep.subr.mxu0 %v1861
    %1925 = vmatpush1.msra.mxu0 %v1860
    %1926 = vmatprep.subr.mxu0 %v1863
    %1927 = vmatpush1.msra.mxu0 %v1862
    %1928 = vmatprep.subr.mxu0 %v1865
    %1929 = vmatpush1.msra.mxu0 %v1864
    %1930 = vmatprep.mubr.f32.mxu0 %v1004
    %1931 = vmatmul.mubr.f32.gmra.mrb[0].mxu0 %v1002
    %v1932 = vpop.f32.mrb[0].mxu0
    %v1933 = vadd.f32 0.0, %v1932
    %v1934 = vpop.f32.mrb[0].mxu0
    %v1935 = vadd.f32 0.0, %v1934
    %1936 = vmatprep.mubr.f32.mxu0 %v1010
    %1937 = vmatmul.mubr.f32.gmra.mrb[0].mxu0 %v1008
    %v1938 = vpop.f32.mrb[0].mxu0
    %v1939 = vadd.f32 0.0, %v1938
    %v1940 = vpop.f32.mrb[0].mxu0
    %v1941 = vadd.f32 0.0, %v1940
    %1942 = vmatprep.mubr.f32.mxu0 %v1016
    %1943 = vmatmul.mubr.f32.gmra.mrb[0].mxu0 %v1014
    %v1944 = vpop.f32.mrb[0].mxu0
    %v1945 = vadd.f32 0.0, %v1944
    %v1946 = vpop.f32.mrb[0].mxu0
    %v1947 = vadd.f32 0.0, %v1946
    %1948 = vmatprep.mubr.f32.mxu0 %v1022
    %1949 = vmatmul.mubr.f32.gmra.mrb[0].mxu0 %v1020
    %v1950 = vpop.f32.mrb[0].mxu0
    %v1951 = vadd.f32 0.0, %v1950
    %v1952 = vpop.f32.mrb[0].mxu0
    %v1953 = vadd.f32 0.0, %v1952
    %1954 = vmatprep.mubr.f32.mxu0 %v1028
    %1955 = vmatmul.mubr.f32.gmra.mrb[0].mxu0 %v1026
    %v1956 = vpop.f32.mrb[0].mxu0
    %v1957 = vadd.f32 0.0, %v1956
    %v1958 = vpop.f32.mrb[0].mxu0
    %v1959 = vadd.f32 0.0, %v1958
    %1960 = vdwg.mxu0
    %1961 = vst [vmem:[%s2] sm:$0xff] %v1933
    %1962 = vst [vmem:[%s2 + $0x8] sm:$0xff] %v1935
    %1963 = vst [vmem:[%s2 + $0x10] sm:$0xff] %v1939
    %1964 = vst [vmem:[%s2 + $0x18] sm:$0xff] %v1941
    %1965 = vst [vmem:[%s2 + $0x20] sm:$0xff] %v1945
    %1966 = vst [vmem:[%s2 + $0x28] sm:$0xff] %v1947
    %1967 = vst [vmem:[%s2 + $0x30] sm:$0xff] %v1951
    %1968 = vst [vmem:[%s2 + $0x38] sm:$0xff] %v1953
    %1969 = vst [vmem:[%s2 + $0x40] sm:$0xff] %v1957
    %1970 = vst [vmem:[%s2 + $0x48] sm:$0xff] %v1959
    // Predicated region
    $region14: #{transform_apply.1} parent=1 // pred_check
      _
    $region15: #{transform_apply.1} parent=1 // pred_check_branch
      %1972 = sbr.rel (0) target = $region17
    $region16: #{transform_apply.1} parent=1 // pred_region
      _
    $region17: #{transform_apply.1} parent=1 // pred_fallthru
      _
    // Predicated region
    $region18: #{transform_apply.1} parent=1 // pred_check
      _
    $region19: #{transform_apply.1} parent=1 // pred_check_branch
      %1974 = sbr.rel (0) target = $region21
    $region20: #{transform_apply.1} parent=1 // pred_region
      _
    $region21: #{transform_apply.1} parent=1 // pred_fallthru
      _
    %1975 = vsyncpa [#allocation3], 1

</llo_original>
